<compile_context>
chip_gen: v6e
topology: v6e:2x2x1
jax: 0.10.0
libtpu: 0.0.40
codegen_flags: <defaults>
</compile_context>

<pallas_src>
import functools
import math

import jax
import jax.numpy as jnp
from jax import lax
from jax.experimental import pallas as pl
from jax.experimental.pallas import tpu as pltpu


def _round_up(x, m):
    return (x + m - 1) // m * m


def _tile_bytes(shape, dtype):
    """Lane/sublane-padded VMEM bytes for one buffer of `shape`."""
    item = jnp.dtype(dtype).itemsize
    lead = 1
    for s in shape[:-2]:
        lead *= s
    sub = shape[-2] if len(shape) >= 2 else 1
    lane = shape[-1]
    sub_tile = 8 * max(1, 4 // item)          # 8 for f32, 16 for bf16, 32 for i8
    return lead * _round_up(sub, sub_tile) * _round_up(lane, 128) * item


def _usable_vmem_bytes():
    """Generation-aware VMEM budget (~3/4 of physical capacity)."""
    try:
        cap = int(pltpu.get_tpu_info().vmem_capacity_bytes)
    except Exception:
        cap = 64 * 1024 * 1024                # conservative fallback
    return (cap * 3) // 4


def _choose_t_h(requested, h1, row_pitch, fits):
    """Largest row-tile height that fits VMEM.

    A single tile (t_h == h1) is always layout-legal (full-dim block); tiled
    cases keep t_h*row_pitch a multiple of 8 so the output block stays
    sublane-aligned.
    """
    mult = 8 // math.gcd(row_pitch, 8)
    upper = h1 if requested is None else max(1, min(int(requested), h1))
    cands = []
    if upper == h1:
        cands.append(h1)
    cands.extend(range((upper // mult) * mult, 0, -mult))
    if not cands:
        cands.append(h1)
    for th in cands:
        if fits(th):
            return th
    return None


def _make_kernel(*, t_h, row_pitch, n_mm, kh_of, col_of, dil, n_pad, m_span):
    """Build the fused conv kernel body (all sizes are Python statics)."""

    def kernel(x_ref, w_ref, bias_ref, o_ref):
        # x_ref:    (1, P_in, K)       flat padded image, one batch element (resident)
        # w_ref:    (n_mm, K, N_pad)   one (K, N) weight slice per matmul
        # bias_ref: (1, N_pad) f32
        # o_ref:    (1, t_h*row_pitch, N_pad)   flat output slab (lane+sublane dense)
        oh0 = pl.program_id(1) * t_h
        acc = jnp.zeros((m_span, n_pad), jnp.float32)
        # Back-to-back MXU chain: only the LHS slab load sits between consecutive
        # dots feeding `acc` (lets v7x keep partial sums in the MRB).
        for i in range(n_mm):
            base = (oh0 + kh_of[i] * dil) * row_pitch + col_of[i]
            lhs = x_ref[0, pl.ds(base, m_span), :]
            acc = acc + jnp.dot(lhs, w_ref[i], preferred_element_type=jnp.float32)
        acc = acc + bias_ref[...]
        o_ref[0, pl.ds(0, m_span), :] = acc.astype(o_ref.dtype)

    return kernel


@functools.partial(
    jax.jit,
    static_argnames=("kernel_size", "dilation", "padding", "stride", "fold",
                     "t_h", "compute_dtype", "single_buffer_invariants"))
def _position_conv2d_impl(x, weight, bias, *, kernel_size, dilation, padding,
                          stride, fold, t_h, compute_dtype,
                          single_buffer_invariants):
    b, c, h_img, w_img = x.shape
    oc = weight.shape[0]
    k, d = kernel_size, dilation
    in_dtype = x.dtype
    cdt = in_dtype if compute_dtype is None else jnp.dtype(compute_dtype)

    # Dense (stride-1) output extents; stride>1 is applied by subsampling after.
    h1 = h_img + 2 * padding - d * (k - 1)
    w1 = w_img + 2 * padding - d * (k - 1)
    if h1 < 1 or w1 < 1:
        raise ValueError("kernel does not fit the padded input")
    h_out = (h_img + 2 * padding - d * (k - 1) - 1) // stride + 1
    w_out = (w_img + 2 * padding - d * (k - 1) - 1) // stride + 1

    if fold is None:
        fold = (k > 1) and (k * c <= 128)
    n_pad = _round_up(oc, 128)
    w_padded = w_img + 2 * padding
    row_pitch = w1 if fold else w_padded      # columns per flattened image row
    k_lanes = k * c if fold else c            # contraction size K
    n_mm = k if fold else k * k               # matmuls per grid step

    usable = _usable_vmem_bytes()
    w_bufs = 1 if single_buffer_invariants else 2

    def vmem_need(th, x_bufs):
        tiles = -(-h1 // th)
        hp = tiles * th + d * (k - 1)
        ms = (th - 1) * row_pitch + w1
        return (x_bufs * _tile_bytes((1, hp * row_pitch, k_lanes), cdt)
                + w_bufs * _tile_bytes((n_mm, k_lanes, n_pad), cdt)
                + w_bufs * _tile_bytes((1, n_pad), jnp.float32)
                + 2 * _tile_bytes((1, th * row_pitch, n_pad), in_dtype)
                + _tile_bytes((ms, n_pad), jnp.float32)     # accumulator headroom
                + (2 << 20))                                # misc scratch margin

    x_bufs = 2
    th = _choose_t_h(t_h, h1, row_pitch, lambda t: vmem_need(t, 2) <= usable)
    if th is None and single_buffer_invariants:
        x_bufs = 1                            # single-buffer the resident image
        th = _choose_t_h(t_h, h1, row_pitch, lambda t: vmem_need(t, 1) <= usable)
    if th is None:
        # TODO(synk): H-halo-tiled resident input (manual DMA double buffering)
        # for images whose lane-padded slab alone exceeds VMEM (v7x, big stems).
        raise ValueError("PositionConv2d: padded input does not fit in VMEM; "
                         "H-halo input tiling is not implemented yet.")
    h_tiles = -(-h1 // th)
    h1_pad = h_tiles * th
    m_span = (th - 1) * row_pitch + w1
    vmem_limit = int(min(usable, max(vmem_need(th, x_bufs) + (4 << 20), 32 << 20)))

    # ---- operand preparation (pure XLA layout glue, no k*k HBM expansion) ----
    x_nhwc = jnp.transpose(x, (0, 2, 3, 1))
    x_padded = jnp.pad(
        x_nhwc,
        ((0, 0), (padding, padding + (h1_pad - h1)), (padding, padding), (0, 0)))
    hp = x_padded.shape[1]                    # == h1_pad + d*(k-1)
    if fold:
        # Fold the k column taps into lanes ([..., kw*C + ci]): free when
        # k*C <= 128 (lane dim was padded to 128 anyway), K becomes k*C.
        cols = [x_padded[:, :, kw * d: kw * d + w1, :] for kw in range(k)]
        x_proc = jnp.stack(cols, axis=3).reshape(b, hp * w1, k * c)
        w4 = weight.reshape(oc, c, k, k)
        w_prep = jnp.transpose(w4, (2, 3, 1, 0)).reshape(k, k * c, oc)
        mm_kh = tuple(range(k))
        mm_col = (0,) * k
    else:
        # Generic path: flat (H*W_pad, C) image; per-(kh,kw) contiguous row
        # spans of the flattened slab (a few junk columns per row are computed
        # and sliced off afterwards).
        x_proc = x_padded.reshape(b, hp * w_padded, c)
        w_prep = jnp.transpose(weight, (2, 1, 0))             # (k*k, C, oc)
        mm_kh = tuple(i // k for i in range(k * k))
        mm_col = tuple((i % k) * d for i in range(k * k))
    x_proc = x_proc.astype(cdt)
    w_prep = jnp.pad(w_prep, ((0, 0), (0, 0), (0, n_pad - oc))).astype(cdt)
    bias_prep = jnp.pad(bias.astype(jnp.float32), (0, n_pad - oc)).reshape(1, n_pad)
    p_in = x_proc.shape[1]

    kernel = _make_kernel(t_h=th, row_pitch=row_pitch, n_mm=n_mm, kh_of=mm_kh,
                          col_of=mm_col, dil=d, n_pad=n_pad, m_span=m_span)

    def _spec(shape, index_map, single_buf):
        if single_buf:
            return pl.BlockSpec(shape, index_map, pipeline_mode=pl.Buffered(1))
        return pl.BlockSpec(shape, index_map)

    x_spec = _spec((1, p_in, k_lanes), lambda bi, hi: (bi, 0, 0),
                   single_buffer_invariants and x_bufs == 1)
    w_spec = _spec((n_mm, k_lanes, n_pad), lambda bi, hi: (0, 0, 0),
                   single_buffer_invariants)
    bias_spec = _spec((1, n_pad), lambda bi, hi: (0, 0), single_buffer_invariants)
    out_spec = pl.BlockSpec((1, th * row_pitch, n_pad), lambda bi, hi: (bi, hi, 0))

    itemsz = jnp.dtype(cdt).itemsize
    flops = 2 * b * h_tiles * n_mm * m_span * k_lanes * n_pad
    bytes_accessed = (x_proc.size * itemsz + w_prep.size * itemsz
                      + bias_prep.size * 4
                      + b * h1_pad * row_pitch * n_pad
                      * jnp.dtype(in_dtype).itemsize)

    out_flat = pl.pallas_call(
        kernel,
        out_shape=jax.ShapeDtypeStruct((b, h1_pad * row_pitch, n_pad), in_dtype),
        grid_spec=pltpu.PrefetchScalarGridSpec(
            num_scalar_prefetch=0,
            grid=(b, h_tiles),
            in_specs=[x_spec, w_spec, bias_spec],
            out_specs=out_spec),
        compiler_params=pltpu.CompilerParams(
            dimension_semantics=("parallel", "parallel"),
            vmem_limit_bytes=vmem_limit),
        cost_estimate=pl.CostEstimate(flops=flops, transcendentals=0,
                                      bytes_accessed=bytes_accessed),
    )(x_proc, w_prep, bias_prep)

    out = out_flat.reshape(b, h1_pad, row_pitch, n_pad)[:, :h1, :w1, :oc]
    if stride > 1:
        out = out[:, ::stride, ::stride, :]
    out = out[:, :h_out, :w_out, :]
    # Reproduce the module's `result[oc*b + batch]` filling followed by the flat
    # .view(b, out_channels, width, height) reinterpretation.
    return jnp.transpose(out, (3, 0, 1, 2)).reshape(b, oc, h_out, w_out)


def position_conv2d(x, weight, bias, *, kernel_size, dilation=1, padding=0,
                    stride=1, fold=None, t_h=None, compute_dtype=None):
    """Pallas TPU implementation of PositionConv2d.forward.

    x:      (b, c, w, h) NCHW input (module naming)
    weight: (out_channels, c, kernel_size * kernel_size)
    bias:   (out_channels,)
    Returns (b, out_channels, width, height) with the same (scrambled)
    batch/out-channel interleaving as the reference PyTorch module.
    """
    kwargs = dict(kernel_size=kernel_size, dilation=dilation, padding=padding,
                  stride=stride, fold=fold, t_h=t_h, compute_dtype=compute_dtype)
    try:
        return _position_conv2d_impl(x, weight, bias,
                                     single_buffer_invariants=True, **kwargs)
    except Exception:
        # Fallback for jax builds without BlockSpec.pipeline_mode / pl.Buffered.
        return _position_conv2d_impl(x, weight, bias,
                                     single_buffer_invariants=False, **kwargs)


if __name__ == "__main__":
    key = jax.random.PRNGKey(0)
    k_x, k_w, k_b = jax.random.split(key, 3)

    b, c, spatial = 2, 4, 16
    oc, ksz, pad, dil = 8, 3, 1, 1

    # Deterministic synthetic parameters (the PyTorch module never initializes
    # its nn.Parameters, so any deterministic init is acceptable).
    x = jax.random.normal(k_x, (b, c, spatial, spatial), dtype=jnp.float32)
    weight = 0.1 * jax.random.normal(k_w, (oc, c, ksz * ksz), dtype=jnp.float32)
    bias = 0.1 * jax.random.normal(k_b, (oc,), dtype=jnp.float32)

    def reference(stride):
        # Independent reference: lax conv + the module's batch/channel scramble.
        w4 = weight.reshape(oc, c, ksz, ksz)
        r = lax.conv_general_dilated(
            x, w4, window_strides=(stride, stride),
            padding=[(pad, pad), (pad, pad)],
            rhs_dilation=(dil, dil),
            dimension_numbers=("NCHW", "OIHW", "NCHW"))
        r = r + bias.reshape(1, oc, 1, 1)
        H, W = r.shape[2], r.shape[3]
        return jnp.transpose(r, (1, 0, 2, 3)).reshape(b, oc, H, W)

    # 1) Main path: folded contraction (K = k*C), f32, t_h = full output height.
    out = position_conv2d(x, weight, bias, kernel_size=ksz, dilation=dil,
                          padding=pad, stride=1)
    out = jax.block_until_ready(out)
    ref = reference(1)
    assert out.shape == ref.shape, (out.shape, ref.shape)
    assert float(jnp.max(jnp.abs(out - ref))) < 1e-4

    # 2) Generic (un-folded) path with a tiled row axis, still flat slab stores.
    out_nf = position_conv2d(x, weight, bias, kernel_size=ksz, dilation=dil,
                             padding=pad, stride=1, fold=False, t_h=8)
    out_nf = jax.block_until_ready(out_nf)
    assert float(jnp.max(jnp.abs(out_nf - ref))) < 1e-4

    # 3) stride > 1 (dense conv + wrapper subsampling).
    out_s2 = position_conv2d(x, weight, bias, kernel_size=ksz, dilation=dil,
                             padding=pad, stride=2)
    out_s2 = jax.block_until_ready(out_s2)
    ref2 = reference(2)
    assert out_s2.shape == ref2.shape, (out_s2.shape, ref2.shape)
    assert float(jnp.max(jnp.abs(out_s2 - ref2))) < 1e-4

    # 4) bf16 inputs/weights (f32 accumulation) - the v6e/v7x DMA-halving mode.
    out_bf = position_conv2d(x, weight, bias, kernel_size=ksz, dilation=dil,
                             padding=pad, stride=1, compute_dtype=jnp.bfloat16)
    out_bf = jax.block_until_ready(out_bf)
    assert float(jnp.max(jnp.abs(out_bf - ref))) < 5e-2

    print("KERNEL_OK")
</pallas_src>

<mosaic_0001>
module attributes {stable_mosaic.version = 11 : i64} {
  func.func @kernel(%arg0: i32, %arg1: i32, %arg2: memref<1x288x12xf32, #tpu.memory_space<vmem>>, %arg3: memref<3x12x128xf32, #tpu.memory_space<vmem>>, %arg4: memref<1x128xf32, #tpu.memory_space<vmem>>, %arg5: memref<1x256x128xf32, #tpu.memory_space<vmem>>) attributes {dimension_semantics = [#tpu.dimension_semantics<parallel>, #tpu.dimension_semantics<parallel>], iteration_bounds = array<i64: 2, 1>, scalar_prefetch = 0 : i64, scratch_operands = 0 : i64, tpu.core_type = #tpu.core_type<tc>, window_params = [{transform_indices = @transform_0, window_bounds = array<i64: 1, 288, 12>}, {pipeline_mode = #tpu.pipeline_mode<synchronous>, transform_indices = @transform_1, window_bounds = array<i64: 3, 12, 128>}, {pipeline_mode = #tpu.pipeline_mode<synchronous>, transform_indices = @transform_2, window_bounds = array<i64: 1, 128>}, {transform_indices = @transform_3, window_bounds = array<i64: 1, 256, 128>}]} {
    %c16_i32 = arith.constant 16 : i32
    %0 = arith.muli %arg1, %c16_i32 : i32
    %cst = arith.constant 0.000000e+00 : f32
    %1 = vector.broadcast %cst : f32 to vector<256x128xf32>
    %c0_i32 = arith.constant 0 : i32
    %2 = arith.addi %0, %c0_i32 : i32
    %c16_i32_0 = arith.constant 16 : i32
    %3 = arith.muli %2, %c16_i32_0 : i32
    %c0_i32_1 = arith.constant 0 : i32
    %4 = arith.addi %3, %c0_i32_1 : i32
    %c0 = arith.constant 0 : index
    %5 = arith.index_cast %4 : i32 to index
    %c0_2 = arith.constant 0 : index
    %6 = vector.load %arg2[%c0, %5, %c0_2] : memref<1x288x12xf32, #tpu.memory_space<vmem>>, vector<1x256x12xf32>
    %7 = vector.shape_cast %6 : vector<1x256x12xf32> to vector<256x12xf32>
    %c0_3 = arith.constant 0 : index
    %c0_4 = arith.constant 0 : index
    %c0_5 = arith.constant 0 : index
    %8 = vector.load %arg3[%c0_3, %c0_4, %c0_5] : memref<3x12x128xf32, #tpu.memory_space<vmem>>, vector<1x12x128xf32>
    %9 = vector.shape_cast %8 : vector<1x12x128xf32> to vector<12x128xf32>
    %cst_6 = arith.constant dense<0.000000e+00> : vector<256x128xf32>
    %10 = tpu.matmul %7, %9, %cst_6 {dimension_numbers = #tpu.dot_dimension_numbers<[1], [0], [0], [1], [0, 0, 1, 1], [], []>} : vector<256x12xf32>, vector<12x128xf32>, vector<256x128xf32> -> vector<256x128xf32>
    %11 = arith.addf %1, %10 : vector<256x128xf32>
    %c1_i32 = arith.constant 1 : i32
    %12 = arith.addi %0, %c1_i32 : i32
    %c16_i32_7 = arith.constant 16 : i32
    %13 = arith.muli %12, %c16_i32_7 : i32
    %c0_i32_8 = arith.constant 0 : i32
    %14 = arith.addi %13, %c0_i32_8 : i32
    %c0_9 = arith.constant 0 : index
    %15 = arith.index_cast %14 : i32 to index
    %c0_10 = arith.constant 0 : index
    %16 = vector.load %arg2[%c0_9, %15, %c0_10] : memref<1x288x12xf32, #tpu.memory_space<vmem>>, vector<1x256x12xf32>
    %17 = vector.shape_cast %16 : vector<1x256x12xf32> to vector<256x12xf32>
    %c1 = arith.constant 1 : index
    %c0_11 = arith.constant 0 : index
    %c0_12 = arith.constant 0 : index
    %18 = vector.load %arg3[%c1, %c0_11, %c0_12] : memref<3x12x128xf32, #tpu.memory_space<vmem>>, vector<1x12x128xf32>
    %19 = vector.shape_cast %18 : vector<1x12x128xf32> to vector<12x128xf32>
    %cst_13 = arith.constant dense<0.000000e+00> : vector<256x128xf32>
    %20 = tpu.matmul %17, %19, %cst_13 {dimension_numbers = #tpu.dot_dimension_numbers<[1], [0], [0], [1], [0, 0, 1, 1], [], []>} : vector<256x12xf32>, vector<12x128xf32>, vector<256x128xf32> -> vector<256x128xf32>
    %21 = arith.addf %11, %20 : vector<256x128xf32>
    %c2_i32 = arith.constant 2 : i32
    %22 = arith.addi %0, %c2_i32 : i32
    %c16_i32_14 = arith.constant 16 : i32
    %23 = arith.muli %22, %c16_i32_14 : i32
    %c0_i32_15 = arith.constant 0 : i32
    %24 = arith.addi %23, %c0_i32_15 : i32
    %c0_16 = arith.constant 0 : index
    %25 = arith.index_cast %24 : i32 to index
    %c0_17 = arith.constant 0 : index
    %26 = vector.load %arg2[%c0_16, %25, %c0_17] : memref<1x288x12xf32, #tpu.memory_space<vmem>>, vector<1x256x12xf32>
    %27 = vector.shape_cast %26 : vector<1x256x12xf32> to vector<256x12xf32>
    %c2 = arith.constant 2 : index
    %c0_18 = arith.constant 0 : index
    %c0_19 = arith.constant 0 : index
    %28 = vector.load %arg3[%c2, %c0_18, %c0_19] : memref<3x12x128xf32, #tpu.memory_space<vmem>>, vector<1x12x128xf32>
    %29 = vector.shape_cast %28 : vector<1x12x128xf32> to vector<12x128xf32>
    %cst_20 = arith.constant dense<0.000000e+00> : vector<256x128xf32>
    %30 = tpu.matmul %27, %29, %cst_20 {dimension_numbers = #tpu.dot_dimension_numbers<[1], [0], [0], [1], [0, 0, 1, 1], [], []>} : vector<256x12xf32>, vector<12x128xf32>, vector<256x128xf32> -> vector<256x128xf32>
    %31 = arith.addf %21, %30 : vector<256x128xf32>
    %c0_21 = arith.constant 0 : index
    %c0_22 = arith.constant 0 : index
    %32 = vector.load %arg4[%c0_21, %c0_22] : memref<1x128xf32, #tpu.memory_space<vmem>>, vector<1x128xf32>
    %33 = vector.broadcast %32 : vector<1x128xf32> to vector<256x128xf32>
    %34 = arith.addf %31, %33 : vector<256x128xf32>
    %c0_23 = arith.constant 0 : index
    %c0_24 = arith.constant 0 : index
    %c0_25 = arith.constant 0 : index
    %35 = vector.load %arg5[%c0_23, %c0_24, %c0_25] : memref<1x256x128xf32, #tpu.memory_space<vmem>>, vector<1x256x128xf32>
    %36 = vector.shape_cast %35 : vector<1x256x128xf32> to vector<256x128xf32>
    %37 = vector.shape_cast %34 : vector<256x128xf32> to vector<1x256x128xf32>
    tpu.vector_store %arg5[%c0_23, %c0_24, %c0_25], %37 {strides = array<i32>} : memref<1x256x128xf32, #tpu.memory_space<vmem>>, vector<1x256x128xf32>,
    return
  }
  func.func @transform_0(%arg0: i32, %arg1: i32) -> (i32, i32, i32) {
    %c0_i32 = arith.constant 0 : i32
    %c0_i32_0 = arith.constant 0 : i32
    %c0_i32_1 = arith.constant 0 : i32
    return %arg0, %c0_i32, %c0_i32_0 : i32, i32, i32
  }
  func.func @transform_1(%arg0: i32, %arg1: i32) -> (i32, i32, i32) {
    %c0_i32 = arith.constant 0 : i32
    %c0_i32_0 = arith.constant 0 : i32
    %c0_i32_1 = arith.constant 0 : i32
    %c0_i32_2 = arith.constant 0 : i32
    return %c0_i32, %c0_i32_0, %c0_i32_1 : i32, i32, i32
  }
  func.func @transform_2(%arg0: i32, %arg1: i32) -> (i32, i32) {
    %c0_i32 = arith.constant 0 : i32
    %c0_i32_0 = arith.constant 0 : i32
    %c0_i32_1 = arith.constant 0 : i32
    return %c0_i32, %c0_i32_0 : i32, i32
  }
  func.func @transform_3(%arg0: i32, %arg1: i32) -> (i32, i32, i32) {
    %c0_i32 = arith.constant 0 : i32
    %c0_i32_0 = arith.constant 0 : i32
    return %arg0, %arg1, %c0_i32 : i32, i32, i32
  }
}

module attributes {stable_mosaic.version = 11 : i64} {
  func.func @kernel(%arg0: i32, %arg1: i32, %arg2: memref<1x288x12xf32, #tpu.memory_space<vmem>>, %arg3: memref<3x12x128xf32, #tpu.memory_space<vmem>>, %arg4: memref<1x128xf32, #tpu.memory_space<vmem>>, %arg5: memref<1x256x128xf32, #tpu.memory_space<vmem>>) attributes {dimension_semantics = [#tpu.dimension_semantics<parallel>, #tpu.dimension_semantics<parallel>], iteration_bounds = array<i64: 2, 1>, scalar_prefetch = 0 : i64, scratch_operands = 0 : i64, tpu.core_type = #tpu.core_type<tc>, window_params = [{transform_indices = @transform_0, window_bounds = array<i64: 1, 288, 12>}, {pipeline_mode = #tpu.pipeline_mode<synchronous>, transform_indices = @transform_1, window_bounds = array<i64: 3, 12, 128>}, {pipeline_mode = #tpu.pipeline_mode<synchronous>, transform_indices = @transform_2, window_bounds = array<i64: 1, 128>}, {transform_indices = @transform_3, window_bounds = array<i64: 1, 256, 128>}]} {
    %c16_i32 = arith.constant 16 : i32
    %0 = arith.muli %arg1, %c16_i32 : i32
    %cst = arith.constant 0.000000e+00 : f32
    %1 = vector.broadcast %cst : f32 to vector<256x128xf32>
    %c0_i32 = arith.constant 0 : i32
    %2 = arith.addi %0, %c0_i32 : i32
    %c16_i32_0 = arith.constant 16 : i32
    %3 = arith.muli %2, %c16_i32_0 : i32
    %c0_i32_1 = arith.constant 0 : i32
    %4 = arith.addi %3, %c0_i32_1 : i32
    %c0 = arith.constant 0 : index
    %5 = arith.index_cast %4 : i32 to index
    %c0_2 = arith.constant 0 : index
    %6 = vector.load %arg2[%c0, %5, %c0_2] : memref<1x288x12xf32, #tpu.memory_space<vmem>>, vector<1x256x12xf32>
    %7 = vector.shape_cast %6 : vector<1x256x12xf32> to vector<256x12xf32>
    %c0_3 = arith.constant 0 : index
    %c0_4 = arith.constant 0 : index
    %c0_5 = arith.constant 0 : index
    %8 = vector.load %arg3[%c0_3, %c0_4, %c0_5] : memref<3x12x128xf32, #tpu.memory_space<vmem>>, vector<1x12x128xf32>
    %9 = vector.shape_cast %8 : vector<1x12x128xf32> to vector<12x128xf32>
    %cst_6 = arith.constant dense<0.000000e+00> : vector<256x128xf32>
    %10 = tpu.matmul %7, %9, %cst_6 {dimension_numbers = #tpu.dot_dimension_numbers<[1], [0], [0], [1], [0, 0, 1, 1], [], []>} : vector<256x12xf32>, vector<12x128xf32>, vector<256x128xf32> -> vector<256x128xf32>
    %11 = arith.addf %1, %10 : vector<256x128xf32>
    %c1_i32 = arith.constant 1 : i32
    %12 = arith.addi %0, %c1_i32 : i32
    %c16_i32_7 = arith.constant 16 : i32
    %13 = arith.muli %12, %c16_i32_7 : i32
    %c0_i32_8 = arith.constant 0 : i32
    %14 = arith.addi %13, %c0_i32_8 : i32
    %c0_9 = arith.constant 0 : index
    %15 = arith.index_cast %14 : i32 to index
    %c0_10 = arith.constant 0 : index
    %16 = vector.load %arg2[%c0_9, %15, %c0_10] : memref<1x288x12xf32, #tpu.memory_space<vmem>>, vector<1x256x12xf32>
    %17 = vector.shape_cast %16 : vector<1x256x12xf32> to vector<256x12xf32>
    %c1 = arith.constant 1 : index
    %c0_11 = arith.constant 0 : index
    %c0_12 = arith.constant 0 : index
    %18 = vector.load %arg3[%c1, %c0_11, %c0_12] : memref<3x12x128xf32, #tpu.memory_space<vmem>>, vector<1x12x128xf32>
    %19 = vector.shape_cast %18 : vector<1x12x128xf32> to vector<12x128xf32>
    %cst_13 = arith.constant dense<0.000000e+00> : vector<256x128xf32>
    %20 = tpu.matmul %17, %19, %cst_13 {dimension_numbers = #tpu.dot_dimension_numbers<[1], [0], [0], [1], [0, 0, 1, 1], [], []>} : vector<256x12xf32>, vector<12x128xf32>, vector<256x128xf32> -> vector<256x128xf32>
    %21 = arith.addf %11, %20 : vector<256x128xf32>
    %c2_i32 = arith.constant 2 : i32
    %22 = arith.addi %0, %c2_i32 : i32
    %c16_i32_14 = arith.constant 16 : i32
    %23 = arith.muli %22, %c16_i32_14 : i32
    %c0_i32_15 = arith.constant 0 : i32
    %24 = arith.addi %23, %c0_i32_15 : i32
    %c0_16 = arith.constant 0 : index
    %25 = arith.index_cast %24 : i32 to index
    %c0_17 = arith.constant 0 : index
    %26 = vector.load %arg2[%c0_16, %25, %c0_17] : memref<1x288x12xf32, #tpu.memory_space<vmem>>, vector<1x256x12xf32>
    %27 = vector.shape_cast %26 : vector<1x256x12xf32> to vector<256x12xf32>
    %c2 = arith.constant 2 : index
    %c0_18 = arith.constant 0 : index
    %c0_19 = arith.constant 0 : index
    %28 = vector.load %arg3[%c2, %c0_18, %c0_19] : memref<3x12x128xf32, #tpu.memory_space<vmem>>, vector<1x12x128xf32>
    %29 = vector.shape_cast %28 : vector<1x12x128xf32> to vector<12x128xf32>
    %cst_20 = arith.constant dense<0.000000e+00> : vector<256x128xf32>
    %30 = tpu.matmul %27, %29, %cst_20 {dimension_numbers = #tpu.dot_dimension_numbers<[1], [0], [0], [1], [0, 0, 1, 1], [], []>} : vector<256x12xf32>, vector<12x128xf32>, vector<256x128xf32> -> vector<256x128xf32>
    %31 = arith.addf %21, %30 : vector<256x128xf32>
    %c0_21 = arith.constant 0 : index
    %c0_22 = arith.constant 0 : index
    %32 = vector.load %arg4[%c0_21, %c0_22] : memref<1x128xf32, #tpu.memory_space<vmem>>, vector<1x128xf32>
    %33 = vector.broadcast %32 : vector<1x128xf32> to vector<256x128xf32>
    %34 = arith.addf %31, %33 : vector<256x128xf32>
    %c0_23 = arith.constant 0 : index
    %c0_24 = arith.constant 0 : index
    %c0_25 = arith.constant 0 : index
    %35 = vector.load %arg5[%c0_23, %c0_24, %c0_25] : memref<1x256x128xf32, #tpu.memory_space<vmem>>, vector<1x256x128xf32>
    %36 = vector.shape_cast %35 : vector<1x256x128xf32> to vector<256x128xf32>
    %37 = vector.shape_cast %34 : vector<256x128xf32> to vector<1x256x128xf32>
    tpu.vector_store %arg5[%c0_23, %c0_24, %c0_25], %37 {strides = array<i32>} : memref<1x256x128xf32, #tpu.memory_space<vmem>>, vector<1x256x128xf32>,
    return
  }
  func.func @transform_0(%arg0: i32, %arg1: i32) -> (i32, i32, i32) {
    %c0_i32 = arith.constant 0 : i32
    %c0_i32_0 = arith.constant 0 : i32
    %c0_i32_1 = arith.constant 0 : i32
    return %arg0, %c0_i32, %c0_i32_0 : i32, i32, i32
  }
  func.func @transform_1(%arg0: i32, %arg1: i32) -> (i32, i32, i32) {
    %c0_i32 = arith.constant 0 : i32
    %c0_i32_0 = arith.constant 0 : i32
    %c0_i32_1 = arith.constant 0 : i32
    %c0_i32_2 = arith.constant 0 : i32
    return %c0_i32, %c0_i32_0, %c0_i32_1 : i32, i32, i32
  }
  func.func @transform_2(%arg0: i32, %arg1: i32) -> (i32, i32) {
    %c0_i32 = arith.constant 0 : i32
    %c0_i32_0 = arith.constant 0 : i32
    %c0_i32_1 = arith.constant 0 : i32
    return %c0_i32, %c0_i32_0 : i32, i32
  }
  func.func @transform_3(%arg0: i32, %arg1: i32) -> (i32, i32, i32) {
    %c0_i32 = arith.constant 0 : i32
    %c0_i32_0 = arith.constant 0 : i32
    return %arg0, %arg1, %c0_i32 : i32, i32, i32
  }
}

</mosaic_0001>

<llo_original>
// kernel: _position_conv2d_impl.1
$region0: #{_position_conv2d_impl.1}
  #allocation0 [shape = 'u32[]', space=smem, size = 0x4, offset = 0x4, fixed_abs, tag = 'smem constant byte address 0x4 - core index']
  #allocation1 [shape = 'u32[144,128]{1,0:T(1,128)}', space=vmem, size = 0x12000, scoped, tag = 'internal scratch']
  %s0 = inlined_call_operand.vmem [shape: f32[2,288,12], index: 0, kind: input, shape index: {}]
  %s1 = inlined_call_operand.vmem [shape: f32[3,12,128], index: 1, kind: input, shape index: {}]
  %s2 = inlined_call_operand.vmem [shape: f32[1,128], index: 2, kind: input, shape index: {}]
  %s3 = inlined_call_operand.vmem [shape: f32[2,256,128], index: 3, kind: output, shape index: {}]
  %s4 = sld [smem:[#allocation0]]
  $region45: #{_position_conv2d_impl.1} parent=0
    _
  %s6 = ssub.s32 1, %s4
  %s7 = scalar_select 0, %s6, %s4
  loop: start=0, step=1, limit=4
  $region2: #{_position_conv2d_impl.1} parent=0 // loop_pre_header
    _
  $region3: #{_position_conv2d_impl.1} parent=0 // loop_header
    %s9 = sphi 0, %s13
    %p10 = scmp.ge.s32.totalorder %s9, 4
    %s16 = sphi 0, %s28
    %s17 = sphi 0, %s24
    %s18 = sphi 0, %s16
    %s19 = sphi 0, %s17
    %s20 = sphi 0, %s18
    %s21 = sphi 0, %s19
    %s31 = sphi 0, %s33
    %s34 = sphi 0, %s31
    %s35 = sphi 0, %s34
    %s51 = sphi 0, %s35
    %s55 = sphi 0, %s55
    %s57 = sphi 0, %s55
    %s58 = sphi 0, %s57
    %s72 = sphi 0, %s58
    %s76 = sphi 0, %s76
    %s78 = sphi 0, %s76
    %s79 = sphi 0, %s78
    %s93 = sphi 0, %s79
    %s101 = sphi 0, %s103
    %s104 = sphi 0, %s101
    %s105 = sphi 0, %s104
    %s121 = sphi 0, %s105
  $region4: #{_position_conv2d_impl.1} parent=0 // loop_header_branch
    %12 = sbr.rel (%p10) target = $region8
  $region5: #{_position_conv2d_impl.1} parent=0 // loop_body
    %s14 = ssub.s32 %s9, 1
    %s15 = ssub.s32 %s9, 2
    %s22 = sadd.s32 1, %s17
    %p23 = scmp.ge.s32.totalorder %s22, 1
    %s24 = scalar_select %p23, 0, %s22
    %s25 = sadd.s32 1, %s16
    %s26 = scalar_select %p23, %s25, %s16
    %p27 = scmp.ge.s32.totalorder %s26, 2
    %s28 = scalar_select %p27, 0, %s26
    %s29 = ssub.s32 %s16, %s28
    %p30 = scmp.eq.s32.totalorder %s29, 0
    %s32 = sadd.s32 %s31, 1
    %s33 = scalar_select %p30, %s31, %s32
    %p36 = pneg %p30
    %p37 = scmp.eq.s32.totalorder %s9, 1
    %p38 = por %p36, %p37
    %p39 = scmp.ne.s32.totalorder %s31, %s34
    %p40 = scmp.eq.s32.totalorder %s9, 0
    %p41 = por %p39, %p40
    %p42 = scmp.ne.s32.totalorder %s31, %s34
    %p43 = scmp.eq.s32.totalorder %s14, 1
    %p44 = por %p42, %p43
    %p45 = scmp.ne.s32.totalorder %s34, %s35
    %p46 = scmp.eq.s32.totalorder %s14, 0
    %p47 = por %p45, %p46
    %p48 = scmp.ne.s32.totalorder %s34, %s35
    %p49 = scmp.eq.s32.totalorder %s15, 1
    %p50 = por %p48, %p49
    %p52 = scmp.ne.s32.totalorder %s35, %s51
    %p53 = scmp.eq.s32.totalorder %s15, 0
    %p54 = por %p52, %p53
    %s56 = sadd.s32 %s55, 1
    %p59 = scmp.eq.s32.totalorder %s9, 1
    %p60 = scmp.ne.s32.totalorder %s55, %s57
    %p61 = scmp.eq.s32.totalorder %s9, 0
    %p62 = por %p60, %p61
    %p63 = scmp.ne.s32.totalorder %s55, %s57
    %p64 = scmp.eq.s32.totalorder %s14, 1
    %p65 = por %p63, %p64
    %p66 = scmp.ne.s32.totalorder %s57, %s58
    %p67 = scmp.eq.s32.totalorder %s14, 0
    %p68 = por %p66, %p67
    %p69 = scmp.ne.s32.totalorder %s57, %s58
    %p70 = scmp.eq.s32.totalorder %s15, 1
    %p71 = por %p69, %p70
    %p73 = scmp.ne.s32.totalorder %s58, %s72
    %p74 = scmp.eq.s32.totalorder %s15, 0
    %p75 = por %p73, %p74
    %s77 = sadd.s32 %s76, 1
    %p80 = scmp.eq.s32.totalorder %s9, 1
    %p81 = scmp.ne.s32.totalorder %s76, %s78
    %p82 = scmp.eq.s32.totalorder %s9, 0
    %p83 = por %p81, %p82
    %p84 = scmp.ne.s32.totalorder %s76, %s78
    %p85 = scmp.eq.s32.totalorder %s14, 1
    %p86 = por %p84, %p85
    %p87 = scmp.ne.s32.totalorder %s78, %s79
    %p88 = scmp.eq.s32.totalorder %s14, 0
    %p89 = por %p87, %p88
    %p90 = scmp.ne.s32.totalorder %s78, %s79
    %p91 = scmp.eq.s32.totalorder %s15, 1
    %p92 = por %p90, %p91
    %p94 = scmp.ne.s32.totalorder %s79, %s93
    %p95 = scmp.eq.s32.totalorder %s15, 0
    %p96 = por %p94, %p95
    %s97 = ssub.s32 %s16, %s28
    %s98 = ssub.s32 %s17, %s24
    %s99 = sor.u32 %s97, %s98
    %p100 = scmp.eq.s32.totalorder %s99, 0
    %s102 = sadd.s32 %s101, 1
    %s103 = scalar_select %p100, %s101, %s102
    %p106 = pneg %p100
    %p107 = scmp.eq.s32.totalorder %s9, 1
    %p108 = por %p106, %p107
    %p109 = scmp.ne.s32.totalorder %s101, %s104
    %p110 = scmp.eq.s32.totalorder %s9, 0
    %p111 = por %p109, %p110
    %p112 = scmp.ne.s32.totalorder %s101, %s104
    %p113 = scmp.eq.s32.totalorder %s14, 1
    %p114 = por %p112, %p113
    %p115 = scmp.ne.s32.totalorder %s104, %s105
    %p116 = scmp.eq.s32.totalorder %s14, 0
    %p117 = por %p115, %p116
    %p118 = scmp.ne.s32.totalorder %s104, %s105
    %p119 = scmp.eq.s32.totalorder %s15, 1
    %p120 = por %p118, %p119
    %p122 = scmp.ne.s32.totalorder %s105, %s121
    %p123 = scmp.eq.s32.totalorder %s15, 0
    %p124 = por %p122, %p123
    %p125 = scmp.le.s32.totalorder 1, %s9
    %p126 = scmp.lt.s32.totalorder %s9, 3
    %p127 = pnand %p125, %p126
    %p128 = pneg %p127
    // Predicated region
    $region9: #{_position_conv2d_impl.1} parent=5 // pred_check
      _
    $region10: #{_position_conv2d_impl.1} parent=5 // pred_check_branch
      %130 = sbr.rel (%p127) target = $region12
    $region11: #{_position_conv2d_impl.1} parent=5 // pred_region
      %s131 = ssub.s32 %s9, 1
      // Predicated region
      $region13: #{_position_conv2d_impl.1} parent=11 // pred_check
        %p132 = pneg %p68
      $region14: #{_position_conv2d_impl.1} parent=11 // pred_check_branch
        %134 = sbr.rel (%p132) target = $region16
      $region15: #{_position_conv2d_impl.1} parent=11 // pred_region
        _
      $region16: #{_position_conv2d_impl.1} parent=11 // pred_fallthru
        _
      // Predicated region
      $region17: #{_position_conv2d_impl.1} parent=11 // pred_check
        %p135 = pneg %p89
      $region18: #{_position_conv2d_impl.1} parent=11 // pred_check_branch
        %137 = sbr.rel (%p135) target = $region20
      $region19: #{_position_conv2d_impl.1} parent=11 // pred_region
        _
      $region20: #{_position_conv2d_impl.1} parent=11 // pred_fallthru
        _
    $region12: #{_position_conv2d_impl.1} parent=5 // pred_fallthru
      _
    %p138 = scmp.lt.s32.totalorder %s9, 2
    // Predicated region
    $region21: #{_position_conv2d_impl.1} parent=5 // pred_check
      %p139 = pneg %p138
    $region22: #{_position_conv2d_impl.1} parent=5 // pred_check_branch
      %141 = sbr.rel (%p139) target = $region24
    $region23: #{_position_conv2d_impl.1} parent=5 // pred_region
      // Predicated region
      $region25: #{_position_conv2d_impl.1} parent=23 // pred_check
        %p142 = pneg %p41
      $region26: #{_position_conv2d_impl.1} parent=23 // pred_check_branch
        %144 = sbr.rel (%p142) target = $region28
      $region27: #{_position_conv2d_impl.1} parent=23 // pred_region
        %p145 = scmp.lt.s32.totalorder %s16, 1
        %s146 = scalar_select %p145, %s16, 1
        %s147 = smul.addr %s146, 36
        %s148 = smul.addr %s147, 8
        %s149 = scalar_lea.vmem %s0, %s148
      $region28: #{_position_conv2d_impl.1} parent=23 // pred_fallthru
        _
    $region24: #{_position_conv2d_impl.1} parent=5 // pred_fallthru
      _
    %p150 = scmp.le.s32.totalorder 1, %s9
    %p151 = scmp.lt.s32.totalorder %s9, 3
    %p152 = pnand %p150, %p151
    %p153 = pneg %p152
    // Predicated region
    $region29: #{_position_conv2d_impl.1} parent=5 // pred_check
      _
    $region30: #{_position_conv2d_impl.1} parent=5 // pred_check_branch
      %155 = sbr.rel (%p152) target = $region32
    $region31: #{_position_conv2d_impl.1} parent=5 // pred_region
      %s156 = ssub.s32 %s9, 1
      %p157 = scmp.lt.s32.totalorder %s18, 1
      %s158 = scalar_select %p157, %s18, 1
      %s159 = smul.addr %s158, 36
      %s160 = smul.addr %s159, 8
      %s161 = scalar_lea.vmem %s0, %s160
      %p162 = pneg %p47
      %p163 = pneg %p44
      %p164 = pneg %p68
      %p165 = pneg %p65
      %p166 = pneg %p89
      %p167 = pneg %p86
      %p168 = pneg %p117
      %p169 = pneg %p114
      %s170 = smul.u32 32, %s19
      %p171 = scmp.lt.s32.totalorder %s18, 1
      %s172 = scalar_select %p171, %s18, 1
      %p173 = scmp.lt.s32.totalorder %s170, 31
      %s174 = scalar_select %p173, %s170, 31
      %s175 = smul.addr %s172, 32
      %s176 = sadd.s32 %s174, %s175
      %s177 = smul.addr %s176, 8
      %s178 = scalar_lea.vmem %s3, %s177
      %p179 = scmp.lt.s32.totalorder %s18, 1
      %s180 = scalar_select %p179, %s18, 1
      %s181 = smul.addr %s180, 36
      %s182 = smul.addr %s181, 8
      %s183 = scalar_lea.vmem %s0, %s182
      %s184 = smul.u32 32, %s19
      %p185 = scmp.lt.s32.totalorder %s18, 1
      %s186 = scalar_select %p185, %s18, 1
      %p187 = scmp.lt.s32.totalorder %s184, 31
      %s188 = scalar_select %p187, %s184, 31
      %s189 = smul.addr %s186, 32
      %s190 = sadd.s32 %s188, %s189
      %s191 = smul.addr %s190, 8
      %s192 = scalar_lea.vmem %s3, %s191
      %s193 = smul.u32 32, %s19
      %s194 = smul.u32 %s19, 16
      %s195 = smul.u32 %s19, 256
      %s196 = scalar_lea.vmem %s183, %s195
      %v197 = vld [vmem:[%s196] sm:$0xff]
      %v198 = vld [vmem:[%s196 + $0x8] sm:$0xff]
      %v199 = vld [vmem:[%s196 + $0x10] sm:$0xff]
      %v200 = vld [vmem:[%s196 + $0x18] sm:$0xff]
      %v201 = vld [vmem:[%s196 + $0x20] sm:$0xff]
      %v202 = vld [vmem:[%s196 + $0x28] sm:$0xff]
      %v203 = vld [vmem:[%s196 + $0x30] sm:$0xff]
      %v204 = vld [vmem:[%s196 + $0x38] sm:$0xff]
      %v205 = vld [vmem:[%s196 + $0x40] sm:$0xff]
      %v206 = vld [vmem:[%s196 + $0x48] sm:$0xff]
      %v207 = vld [vmem:[%s196 + $0x50] sm:$0xff]
      %v208 = vld [vmem:[%s196 + $0x58] sm:$0xff]
      %v209 = vld [vmem:[%s196 + $0x60] sm:$0xff]
      %v210 = vld [vmem:[%s196 + $0x68] sm:$0xff]
      %v211 = vld [vmem:[%s196 + $0x70] sm:$0xff]
      %v212 = vld [vmem:[%s196 + $0x78] sm:$0xff]
      %v213 = vld [vmem:[%s196 + $0x80] sm:$0xff]
      %v214 = vld [vmem:[%s196 + $0x88] sm:$0xff]
      %v215 = vld [vmem:[%s196 + $0x90] sm:$0xff]
      %v216 = vld [vmem:[%s196 + $0x98] sm:$0xff]
      %v217 = vld [vmem:[%s196 + $0xa0] sm:$0xff]
      %v218 = vld [vmem:[%s196 + $0xa8] sm:$0xff]
      %v219 = vld [vmem:[%s196 + $0xb0] sm:$0xff]
      %v220 = vld [vmem:[%s196 + $0xb8] sm:$0xff]
      %v221 = vld [vmem:[%s196 + $0xc0] sm:$0xff]
      %v222 = vld [vmem:[%s196 + $0xc8] sm:$0xff]
      %v223 = vld [vmem:[%s196 + $0xd0] sm:$0xff]
      %v224 = vld [vmem:[%s196 + $0xd8] sm:$0xff]
      %v225 = vld [vmem:[%s196 + $0xe0] sm:$0xff]
      %v226 = vld [vmem:[%s196 + $0xe8] sm:$0xff]
      %v227 = vld [vmem:[%s196 + $0xf0] sm:$0xff]
      %v228 = vld [vmem:[%s196 + $0xf8] sm:$0xff]
      %v229 = vld [vmem:[%s1] sm:$0xff]
      %v230 = vld [vmem:[%s1 + $0x8] sm:$0xf]
      %s231 = sadd.s32 %s194, 1
      %s232 = smul.u32 %s231, 16
      %s233 = scalar_lea.vmem %s183, %s232
      %v234 = vld [vmem:[%s233] sm:$0xff]
      %v235 = vld [vmem:[%s233 + $0x8] sm:$0xff]
      %v236 = vld [vmem:[%s233 + $0x10] sm:$0xff]
      %v237 = vld [vmem:[%s233 + $0x18] sm:$0xff]
      %v238 = vld [vmem:[%s233 + $0x20] sm:$0xff]
      %v239 = vld [vmem:[%s233 + $0x28] sm:$0xff]
      %v240 = vld [vmem:[%s233 + $0x30] sm:$0xff]
      %v241 = vld [vmem:[%s233 + $0x38] sm:$0xff]
      %v242 = vld [vmem:[%s233 + $0x40] sm:$0xff]
      %v243 = vld [vmem:[%s233 + $0x48] sm:$0xff]
      %v244 = vld [vmem:[%s233 + $0x50] sm:$0xff]
      %v245 = vld [vmem:[%s233 + $0x58] sm:$0xff]
      %v246 = vld [vmem:[%s233 + $0x60] sm:$0xff]
      %v247 = vld [vmem:[%s233 + $0x68] sm:$0xff]
      %v248 = vld [vmem:[%s233 + $0x70] sm:$0xff]
      %v249 = vld [vmem:[%s233 + $0x78] sm:$0xff]
      %v250 = vld [vmem:[%s233 + $0x80] sm:$0xff]
      %v251 = vld [vmem:[%s233 + $0x88] sm:$0xff]
      %v252 = vld [vmem:[%s233 + $0x90] sm:$0xff]
      %v253 = vld [vmem:[%s233 + $0x98] sm:$0xff]
      %v254 = vld [vmem:[%s233 + $0xa0] sm:$0xff]
      %v255 = vld [vmem:[%s233 + $0xa8] sm:$0xff]
      %v256 = vld [vmem:[%s233 + $0xb0] sm:$0xff]
      %v257 = vld [vmem:[%s233 + $0xb8] sm:$0xff]
      %v258 = vld [vmem:[%s233 + $0xc0] sm:$0xff]
      %v259 = vld [vmem:[%s233 + $0xc8] sm:$0xff]
      %v260 = vld [vmem:[%s233 + $0xd0] sm:$0xff]
      %v261 = vld [vmem:[%s233 + $0xd8] sm:$0xff]
      %v262 = vld [vmem:[%s233 + $0xe0] sm:$0xff]
      %v263 = vld [vmem:[%s233 + $0xe8] sm:$0xff]
      %v264 = vld [vmem:[%s233 + $0xf0] sm:$0xff]
      %v265 = vld [vmem:[%s233 + $0xf8] sm:$0xff]
      %s266 = scalar_lea.vmem %s1, 16
      %v267 = vld [vmem:[%s266] sm:$0xff]
      %v268 = vld [vmem:[%s266 + $0x8] sm:$0xf]
      %vm269 = vcmask 97280
      %v271 = vsel %vm269, %v234, 0
      %v274 = vsel %vm269, %v235, 0
      %v277 = vsel %vm269, %v236, 0
      %v280 = vsel %vm269, %v237, 0
      %v283 = vsel %vm269, %v238, 0
      %v286 = vsel %vm269, %v239, 0
      %v289 = vsel %vm269, %v240, 0
      %v292 = vsel %vm269, %v241, 0
      %v295 = vsel %vm269, %v242, 0
      %v298 = vsel %vm269, %v243, 0
      %v301 = vsel %vm269, %v244, 0
      %v304 = vsel %vm269, %v245, 0
      %v307 = vsel %vm269, %v246, 0
      %v310 = vsel %vm269, %v247, 0
      %v313 = vsel %vm269, %v248, 0
      %v316 = vsel %vm269, %v249, 0
      %v319 = vsel %vm269, %v250, 0
      %v322 = vsel %vm269, %v251, 0
      %v325 = vsel %vm269, %v252, 0
      %v328 = vsel %vm269, %v253, 0
      %v331 = vsel %vm269, %v254, 0
      %v334 = vsel %vm269, %v255, 0
      %v337 = vsel %vm269, %v256, 0
      %v340 = vsel %vm269, %v257, 0
      %v343 = vsel %vm269, %v258, 0
      %v346 = vsel %vm269, %v259, 0
      %v349 = vsel %vm269, %v260, 0
      %v352 = vsel %vm269, %v261, 0
      %v355 = vsel %vm269, %v262, 0
      %v358 = vsel %vm269, %v263, 0
      %v361 = vsel %vm269, %v264, 0
      %v364 = vsel %vm269, %v265, 0
      %vm366 = vcmask 1043456
      %v368 = vsel %vm366, %v268, 0
      %370 = vmatprep.subr.mxu0 0.0
      %371 = vmatpush1.msra.mxu0 0.0
      %372 = vmatprep.subr.mxu0 0.0
      %373 = vmatpush1.msra.mxu0 0.0
      %374 = vmatprep.subr.mxu0 0.0
      %375 = vmatpush1.msra.mxu0 0.0
      %376 = vmatprep.subr.mxu0 0.0
      %377 = vmatpush1.msra.mxu0 0.0
      %378 = vmatprep.subr.mxu0 0.0
      %379 = vmatpush1.msra.mxu0 0.0
      %380 = vmatprep.subr.mxu0 0.0
      %381 = vmatpush1.msra.mxu0 0.0
      %382 = vmatprep.subr.mxu0 0.0
      %383 = vmatpush1.msra.mxu0 0.0
      %384 = vmatprep.subr.mxu0 0.0
      %385 = vmatpush1.msra.mxu0 0.0
      %386 = vmatprep.subr.mxu0 0.0
      %387 = vmatpush1.msra.mxu0 0.0
      %388 = vmatprep.subr.mxu0 0.0
      %389 = vmatpush1.msra.mxu0 0.0
      %390 = vmatprep.subr.mxu0 0.0
      %391 = vmatpush1.msra.mxu0 0.0
      %392 = vmatprep.subr.mxu0 0.0
      %393 = vmatpush1.msra.mxu0 0.0
      %394 = vmatprep.subr.mxu0 0.0
      %395 = vmatpush1.msra.mxu0 0.0
      %396 = vmatprep.subr.mxu0 0.0
      %397 = vmatpush1.msra.mxu0 0.0
      %398 = vmatprep.subr.mxu0 0.0
      %399 = vmatpush1.msra.mxu0 %v368
      %400 = vmatprep.subr.mxu0 0.0
      %401 = vmatpush1.msra.mxu0 %v267
      %402 = vmatprep.subr.mxu0 0.0
      %403 = vmatpush2.msra.mxu0 0.0
      %404 = vmatprep.subr.mxu0 0.0
      %405 = vmatpush2.msra.mxu0 0.0
      %406 = vmatprep.subr.mxu0 0.0
      %407 = vmatpush2.msra.mxu0 0.0
      %408 = vmatprep.subr.mxu0 0.0
      %409 = vmatpush2.msra.mxu0 0.0
      %410 = vmatprep.subr.mxu0 0.0
      %411 = vmatpush2.msra.mxu0 0.0
      %412 = vmatprep.subr.mxu0 0.0
      %413 = vmatpush2.msra.mxu0 0.0
      %414 = vmatprep.subr.mxu0 0.0
      %415 = vmatpush2.msra.mxu0 0.0
      %416 = vmatprep.subr.mxu0 0.0
      %417 = vmatpush2.msra.mxu0 0.0
      %418 = vmatprep.subr.mxu0 0.0
      %419 = vmatpush2.msra.mxu0 0.0
      %420 = vmatprep.subr.mxu0 0.0
      %421 = vmatpush2.msra.mxu0 0.0
      %422 = vmatprep.subr.mxu0 0.0
      %423 = vmatpush2.msra.mxu0 0.0
      %424 = vmatprep.subr.mxu0 0.0
      %425 = vmatpush2.msra.mxu0 0.0
      %426 = vmatprep.subr.mxu0 0.0
      %427 = vmatpush2.msra.mxu0 0.0
      %428 = vmatprep.subr.mxu0 0.0
      %429 = vmatpush2.msra.mxu0 0.0
      %430 = vmatprep.subr.mxu0 0.0
      %431 = vmatpush2.msra.mxu0 0.0
      %432 = vmatprep.subr.mxu0 0.0
      %433 = vmatpush2.msra.mxu0 0.0
      %434 = vmatprep.mubr.f32.mxu0 0.0
      %435 = vmatmul.mubr.f32.gmra.mxu0 %v271
      %v436 = vpop.f32.mrf.mxu0
      %v437 = vadd.f32 0.0, %v436
      %v438 = vpop.f32.mrf.mxu0
      %439 = vmatprep.mubr.f32.mxu0 0.0
      %440 = vmatmul.mubr.f32.gmra.mxu0 %v274
      %v441 = vpop.f32.mrf.mxu0
      %v442 = vadd.f32 0.0, %v441
      %v443 = vpop.f32.mrf.mxu0
      %444 = vmatprep.mubr.f32.mxu0 0.0
      %445 = vmatmul.mubr.f32.gmra.mxu0 %v277
      %v446 = vpop.f32.mrf.mxu0
      %v447 = vadd.f32 0.0, %v446
      %v448 = vpop.f32.mrf.mxu0
      %449 = vmatprep.mubr.f32.mxu0 0.0
      %450 = vmatmul.mubr.f32.gmra.mxu0 %v280
      %v451 = vpop.f32.mrf.mxu0
      %v452 = vadd.f32 0.0, %v451
      %v453 = vpop.f32.mrf.mxu0
      %454 = vmatprep.mubr.f32.mxu0 0.0
      %455 = vmatmul.mubr.f32.gmra.mxu0 %v283
      %v456 = vpop.f32.mrf.mxu0
      %v457 = vadd.f32 0.0, %v456
      %v458 = vpop.f32.mrf.mxu0
      %459 = vmatprep.mubr.f32.mxu0 0.0
      %460 = vmatmul.mubr.f32.gmra.mxu0 %v286
      %v461 = vpop.f32.mrf.mxu0
      %v462 = vadd.f32 0.0, %v461
      %v463 = vpop.f32.mrf.mxu0
      %464 = vmatprep.mubr.f32.mxu0 0.0
      %465 = vmatmul.mubr.f32.gmra.mxu0 %v289
      %v466 = vpop.f32.mrf.mxu0
      %v467 = vadd.f32 0.0, %v466
      %v468 = vpop.f32.mrf.mxu0
      %469 = vmatprep.mubr.f32.mxu0 0.0
      %470 = vmatmul.mubr.f32.gmra.mxu0 %v292
      %v471 = vpop.f32.mrf.mxu0
      %v472 = vadd.f32 0.0, %v471
      %v473 = vpop.f32.mrf.mxu0
      %474 = vmatprep.mubr.f32.mxu0 0.0
      %475 = vmatmul.mubr.f32.gmra.mxu0 %v295
      %v476 = vpop.f32.mrf.mxu0
      %v477 = vadd.f32 0.0, %v476
      %v478 = vpop.f32.mrf.mxu0
      %479 = vmatprep.mubr.f32.mxu0 0.0
      %480 = vmatmul.mubr.f32.gmra.mxu0 %v298
      %v481 = vpop.f32.mrf.mxu0
      %v482 = vadd.f32 0.0, %v481
      %v483 = vpop.f32.mrf.mxu0
      %484 = vmatprep.mubr.f32.mxu0 0.0
      %485 = vmatmul.mubr.f32.gmra.mxu0 %v301
      %v486 = vpop.f32.mrf.mxu0
      %v487 = vadd.f32 0.0, %v486
      %v488 = vpop.f32.mrf.mxu0
      %489 = vmatprep.mubr.f32.mxu0 0.0
      %490 = vmatmul.mubr.f32.gmra.mxu0 %v304
      %v491 = vpop.f32.mrf.mxu0
      %v492 = vadd.f32 0.0, %v491
      %v493 = vpop.f32.mrf.mxu0
      %494 = vmatprep.mubr.f32.mxu0 0.0
      %495 = vmatmul.mubr.f32.gmra.mxu0 %v307
      %v496 = vpop.f32.mrf.mxu0
      %v497 = vadd.f32 0.0, %v496
      %v498 = vpop.f32.mrf.mxu0
      %499 = vmatprep.mubr.f32.mxu0 0.0
      %500 = vmatmul.mubr.f32.gmra.mxu0 %v310
      %v501 = vpop.f32.mrf.mxu0
      %v502 = vadd.f32 0.0, %v501
      %v503 = vpop.f32.mrf.mxu0
      %504 = vmatprep.mubr.f32.mxu0 0.0
      %505 = vmatmul.mubr.f32.gmra.mxu0 %v313
      %v506 = vpop.f32.mrf.mxu0
      %v507 = vadd.f32 0.0, %v506
      %v508 = vpop.f32.mrf.mxu0
      %509 = vmatprep.mubr.f32.mxu0 0.0
      %510 = vmatmul.mubr.f32.gmra.mxu0 %v316
      %v511 = vpop.f32.mrf.mxu0
      %v512 = vadd.f32 0.0, %v511
      %v513 = vpop.f32.mrf.mxu0
      %514 = vmatprep.mubr.f32.mxu0 0.0
      %515 = vmatmul.mubr.f32.gmra.mxu0 %v319
      %v516 = vpop.f32.mrf.mxu0
      %v517 = vadd.f32 0.0, %v516
      %v518 = vpop.f32.mrf.mxu0
      %519 = vmatprep.mubr.f32.mxu0 0.0
      %520 = vmatmul.mubr.f32.gmra.mxu0 %v322
      %v521 = vpop.f32.mrf.mxu0
      %v522 = vadd.f32 0.0, %v521
      %v523 = vpop.f32.mrf.mxu0
      %524 = vmatprep.mubr.f32.mxu0 0.0
      %525 = vmatmul.mubr.f32.gmra.mxu0 %v325
      %v526 = vpop.f32.mrf.mxu0
      %v527 = vadd.f32 0.0, %v526
      %v528 = vpop.f32.mrf.mxu0
      %529 = vmatprep.mubr.f32.mxu0 0.0
      %530 = vmatmul.mubr.f32.gmra.mxu0 %v328
      %v531 = vpop.f32.mrf.mxu0
      %v532 = vadd.f32 0.0, %v531
      %v533 = vpop.f32.mrf.mxu0
      %534 = vmatprep.mubr.f32.mxu0 0.0
      %535 = vmatmul.mubr.f32.gmra.mxu0 %v331
      %v536 = vpop.f32.mrf.mxu0
      %v537 = vadd.f32 0.0, %v536
      %v538 = vpop.f32.mrf.mxu0
      %539 = vmatprep.mubr.f32.mxu0 0.0
      %540 = vmatmul.mubr.f32.gmra.mxu0 %v334
      %v541 = vpop.f32.mrf.mxu0
      %v542 = vadd.f32 0.0, %v541
      %v543 = vpop.f32.mrf.mxu0
      %544 = vmatprep.mubr.f32.mxu0 0.0
      %545 = vmatmul.mubr.f32.gmra.mxu0 %v337
      %v546 = vpop.f32.mrf.mxu0
      %v547 = vadd.f32 0.0, %v546
      %v548 = vpop.f32.mrf.mxu0
      %549 = vmatprep.mubr.f32.mxu0 0.0
      %550 = vmatmul.mubr.f32.gmra.mxu0 %v340
      %v551 = vpop.f32.mrf.mxu0
      %v552 = vadd.f32 0.0, %v551
      %v553 = vpop.f32.mrf.mxu0
      %554 = vmatprep.mubr.f32.mxu0 0.0
      %555 = vmatmul.mubr.f32.gmra.mxu0 %v343
      %v556 = vpop.f32.mrf.mxu0
      %v557 = vadd.f32 0.0, %v556
      %v558 = vpop.f32.mrf.mxu0
      %559 = vmatprep.mubr.f32.mxu0 0.0
      %560 = vmatmul.mubr.f32.gmra.mxu0 %v346
      %v561 = vpop.f32.mrf.mxu0
      %v562 = vadd.f32 0.0, %v561
      %v563 = vpop.f32.mrf.mxu0
      %564 = vmatprep.mubr.f32.mxu0 0.0
      %565 = vmatmul.mubr.f32.gmra.mxu0 %v349
      %v566 = vpop.f32.mrf.mxu0
      %v567 = vadd.f32 0.0, %v566
      %v568 = vpop.f32.mrf.mxu0
      %569 = vmatprep.mubr.f32.mxu0 0.0
      %570 = vmatmul.mubr.f32.gmra.mxu0 %v352
      %v571 = vpop.f32.mrf.mxu0
      %v572 = vadd.f32 0.0, %v571
      %v573 = vpop.f32.mrf.mxu0
      %574 = vmatprep.mubr.f32.mxu0 0.0
      %575 = vmatmul.mubr.f32.gmra.mxu0 %v355
      %v576 = vpop.f32.mrf.mxu0
      %v577 = vadd.f32 0.0, %v576
      %v578 = vpop.f32.mrf.mxu0
      %579 = vmatprep.mubr.f32.mxu0 0.0
      %580 = vmatmul.mubr.f32.gmra.mxu0 %v358
      %v581 = vpop.f32.mrf.mxu0
      %v582 = vadd.f32 0.0, %v581
      %v583 = vpop.f32.mrf.mxu0
      %584 = vmatprep.mubr.f32.mxu0 0.0
      %585 = vmatmul.mubr.f32.gmra.mxu0 %v361
      %v586 = vpop.f32.mrf.mxu0
      %v587 = vadd.f32 0.0, %v586
      %v588 = vpop.f32.mrf.mxu0
      %589 = vmatprep.mubr.f32.mxu0 0.0
      %590 = vmatmul.mubr.f32.gmra.mxu0 %v364
      %v591 = vpop.f32.mrf.mxu0
      %v592 = vadd.f32 0.0, %v591
      %v593 = vpop.f32.mrf.mxu0
      %594 = vdwg.mxu0
      %v596 = vsel %vm269, %v197, 0
      %v599 = vsel %vm269, %v198, 0
      %v602 = vsel %vm269, %v199, 0
      %v605 = vsel %vm269, %v200, 0
      %v608 = vsel %vm269, %v201, 0
      %v611 = vsel %vm269, %v202, 0
      %v614 = vsel %vm269, %v203, 0
      %v617 = vsel %vm269, %v204, 0
      %v620 = vsel %vm269, %v205, 0
      %v623 = vsel %vm269, %v206, 0
      %v626 = vsel %vm269, %v207, 0
      %v629 = vsel %vm269, %v208, 0
      %v632 = vsel %vm269, %v209, 0
      %v635 = vsel %vm269, %v210, 0
      %v638 = vsel %vm269, %v211, 0
      %v641 = vsel %vm269, %v212, 0
      %v644 = vsel %vm269, %v213, 0
      %v647 = vsel %vm269, %v214, 0
      %v650 = vsel %vm269, %v215, 0
      %v653 = vsel %vm269, %v216, 0
      %v656 = vsel %vm269, %v217, 0
      %v659 = vsel %vm269, %v218, 0
      %v662 = vsel %vm269, %v219, 0
      %v665 = vsel %vm269, %v220, 0
      %v668 = vsel %vm269, %v221, 0
      %v671 = vsel %vm269, %v222, 0
      %v674 = vsel %vm269, %v223, 0
      %v677 = vsel %vm269, %v224, 0
      %v680 = vsel %vm269, %v225, 0
      %v683 = vsel %vm269, %v226, 0
      %v686 = vsel %vm269, %v227, 0
      %v689 = vsel %vm269, %v228, 0
      %v692 = vsel %vm366, %v230, 0
      %694 = vmatprep.subr.mxu0 0.0
      %695 = vmatpush1.msra.mxu0 0.0
      %696 = vmatprep.subr.mxu0 0.0
      %697 = vmatpush1.msra.mxu0 0.0
      %698 = vmatprep.subr.mxu0 0.0
      %699 = vmatpush1.msra.mxu0 0.0
      %700 = vmatprep.subr.mxu0 0.0
      %701 = vmatpush1.msra.mxu0 0.0
      %702 = vmatprep.subr.mxu0 0.0
      %703 = vmatpush1.msra.mxu0 0.0
      %704 = vmatprep.subr.mxu0 0.0
      %705 = vmatpush1.msra.mxu0 0.0
      %706 = vmatprep.subr.mxu0 0.0
      %707 = vmatpush1.msra.mxu0 0.0
      %708 = vmatprep.subr.mxu0 0.0
      %709 = vmatpush1.msra.mxu0 0.0
      %710 = vmatprep.subr.mxu0 0.0
      %711 = vmatpush1.msra.mxu0 0.0
      %712 = vmatprep.subr.mxu0 0.0
      %713 = vmatpush1.msra.mxu0 0.0
      %714 = vmatprep.subr.mxu0 0.0
      %715 = vmatpush1.msra.mxu0 0.0
      %716 = vmatprep.subr.mxu0 0.0
      %717 = vmatpush1.msra.mxu0 0.0
      %718 = vmatprep.subr.mxu0 0.0
      %719 = vmatpush1.msra.mxu0 0.0
      %720 = vmatprep.subr.mxu0 0.0
      %721 = vmatpush1.msra.mxu0 0.0
      %722 = vmatprep.subr.mxu0 0.0
      %723 = vmatpush1.msra.mxu0 %v692
      %724 = vmatprep.subr.mxu0 0.0
      %725 = vmatpush1.msra.mxu0 %v229
      %726 = vmatprep.subr.mxu0 0.0
      %727 = vmatpush2.msra.mxu0 0.0
      %728 = vmatprep.subr.mxu0 0.0
      %729 = vmatpush2.msra.mxu0 0.0
      %730 = vmatprep.subr.mxu0 0.0
      %731 = vmatpush2.msra.mxu0 0.0
      %732 = vmatprep.subr.mxu0 0.0
      %733 = vmatpush2.msra.mxu0 0.0
      %734 = vmatprep.subr.mxu0 0.0
      %735 = vmatpush2.msra.mxu0 0.0
      %736 = vmatprep.subr.mxu0 0.0
      %737 = vmatpush2.msra.mxu0 0.0
      %738 = vmatprep.subr.mxu0 0.0
      %739 = vmatpush2.msra.mxu0 0.0
      %740 = vmatprep.subr.mxu0 0.0
      %741 = vmatpush2.msra.mxu0 0.0
      %742 = vmatprep.subr.mxu0 0.0
      %743 = vmatpush2.msra.mxu0 0.0
      %744 = vmatprep.subr.mxu0 0.0
      %745 = vmatpush2.msra.mxu0 0.0
      %746 = vmatprep.subr.mxu0 0.0
      %747 = vmatpush2.msra.mxu0 0.0
      %748 = vmatprep.subr.mxu0 0.0
      %749 = vmatpush2.msra.mxu0 0.0
      %750 = vmatprep.subr.mxu0 0.0
      %751 = vmatpush2.msra.mxu0 0.0
      %752 = vmatprep.subr.mxu0 0.0
      %753 = vmatpush2.msra.mxu0 0.0
      %754 = vmatprep.subr.mxu0 0.0
      %755 = vmatpush2.msra.mxu0 0.0
      %756 = vmatprep.subr.mxu0 0.0
      %757 = vmatpush2.msra.mxu0 0.0
      %758 = vmatprep.mubr.f32.mxu0 0.0
      %759 = vmatmul.mubr.f32.gmra.mxu0 %v596
      %v760 = vpop.f32.mrf.mxu0
      %v761 = vadd.f32 %v437, %v760
      %v762 = vpop.f32.mrf.mxu0
      %763 = vmatprep.mubr.f32.mxu0 0.0
      %764 = vmatmul.mubr.f32.gmra.mxu0 %v599
      %v765 = vpop.f32.mrf.mxu0
      %v766 = vadd.f32 %v442, %v765
      %v767 = vpop.f32.mrf.mxu0
      %768 = vmatprep.mubr.f32.mxu0 0.0
      %769 = vmatmul.mubr.f32.gmra.mxu0 %v602
      %v770 = vpop.f32.mrf.mxu0
      %v771 = vadd.f32 %v447, %v770
      %v772 = vpop.f32.mrf.mxu0
      %773 = vmatprep.mubr.f32.mxu0 0.0
      %774 = vmatmul.mubr.f32.gmra.mxu0 %v605
      %v775 = vpop.f32.mrf.mxu0
      %v776 = vadd.f32 %v452, %v775
      %v777 = vpop.f32.mrf.mxu0
      %778 = vmatprep.mubr.f32.mxu0 0.0
      %779 = vmatmul.mubr.f32.gmra.mxu0 %v608
      %v780 = vpop.f32.mrf.mxu0
      %v781 = vadd.f32 %v457, %v780
      %v782 = vpop.f32.mrf.mxu0
      %783 = vmatprep.mubr.f32.mxu0 0.0
      %784 = vmatmul.mubr.f32.gmra.mxu0 %v611
      %v785 = vpop.f32.mrf.mxu0
      %v786 = vadd.f32 %v462, %v785
      %v787 = vpop.f32.mrf.mxu0
      %788 = vmatprep.mubr.f32.mxu0 0.0
      %789 = vmatmul.mubr.f32.gmra.mxu0 %v614
      %v790 = vpop.f32.mrf.mxu0
      %v791 = vadd.f32 %v467, %v790
      %v792 = vpop.f32.mrf.mxu0
      %793 = vmatprep.mubr.f32.mxu0 0.0
      %794 = vmatmul.mubr.f32.gmra.mxu0 %v617
      %v795 = vpop.f32.mrf.mxu0
      %v796 = vadd.f32 %v472, %v795
      %v797 = vpop.f32.mrf.mxu0
      %798 = vmatprep.mubr.f32.mxu0 0.0
      %799 = vmatmul.mubr.f32.gmra.mxu0 %v620
      %v800 = vpop.f32.mrf.mxu0
      %v801 = vadd.f32 %v477, %v800
      %v802 = vpop.f32.mrf.mxu0
      %803 = vmatprep.mubr.f32.mxu0 0.0
      %804 = vmatmul.mubr.f32.gmra.mxu0 %v623
      %v805 = vpop.f32.mrf.mxu0
      %v806 = vadd.f32 %v482, %v805
      %v807 = vpop.f32.mrf.mxu0
      %808 = vmatprep.mubr.f32.mxu0 0.0
      %809 = vmatmul.mubr.f32.gmra.mxu0 %v626
      %v810 = vpop.f32.mrf.mxu0
      %v811 = vadd.f32 %v487, %v810
      %v812 = vpop.f32.mrf.mxu0
      %813 = vmatprep.mubr.f32.mxu0 0.0
      %814 = vmatmul.mubr.f32.gmra.mxu0 %v629
      %v815 = vpop.f32.mrf.mxu0
      %v816 = vadd.f32 %v492, %v815
      %v817 = vpop.f32.mrf.mxu0
      %818 = vmatprep.mubr.f32.mxu0 0.0
      %819 = vmatmul.mubr.f32.gmra.mxu0 %v632
      %v820 = vpop.f32.mrf.mxu0
      %v821 = vadd.f32 %v497, %v820
      %v822 = vpop.f32.mrf.mxu0
      %823 = vmatprep.mubr.f32.mxu0 0.0
      %824 = vmatmul.mubr.f32.gmra.mxu0 %v635
      %v825 = vpop.f32.mrf.mxu0
      %v826 = vadd.f32 %v502, %v825
      %v827 = vpop.f32.mrf.mxu0
      %828 = vmatprep.mubr.f32.mxu0 0.0
      %829 = vmatmul.mubr.f32.gmra.mxu0 %v638
      %v830 = vpop.f32.mrf.mxu0
      %v831 = vadd.f32 %v507, %v830
      %v832 = vpop.f32.mrf.mxu0
      %833 = vmatprep.mubr.f32.mxu0 0.0
      %834 = vmatmul.mubr.f32.gmra.mxu0 %v641
      %v835 = vpop.f32.mrf.mxu0
      %v836 = vadd.f32 %v512, %v835
      %v837 = vpop.f32.mrf.mxu0
      %838 = vmatprep.mubr.f32.mxu0 0.0
      %839 = vmatmul.mubr.f32.gmra.mxu0 %v644
      %v840 = vpop.f32.mrf.mxu0
      %v841 = vadd.f32 %v517, %v840
      %v842 = vpop.f32.mrf.mxu0
      %843 = vmatprep.mubr.f32.mxu0 0.0
      %844 = vmatmul.mubr.f32.gmra.mxu0 %v647
      %v845 = vpop.f32.mrf.mxu0
      %v846 = vadd.f32 %v522, %v845
      %v847 = vpop.f32.mrf.mxu0
      %848 = vmatprep.mubr.f32.mxu0 0.0
      %849 = vmatmul.mubr.f32.gmra.mxu0 %v650
      %v850 = vpop.f32.mrf.mxu0
      %v851 = vadd.f32 %v527, %v850
      %v852 = vpop.f32.mrf.mxu0
      %853 = vmatprep.mubr.f32.mxu0 0.0
      %854 = vmatmul.mubr.f32.gmra.mxu0 %v653
      %v855 = vpop.f32.mrf.mxu0
      %v856 = vadd.f32 %v532, %v855
      %v857 = vpop.f32.mrf.mxu0
      %858 = vmatprep.mubr.f32.mxu0 0.0
      %859 = vmatmul.mubr.f32.gmra.mxu0 %v656
      %v860 = vpop.f32.mrf.mxu0
      %v861 = vadd.f32 %v537, %v860
      %v862 = vpop.f32.mrf.mxu0
      %863 = vmatprep.mubr.f32.mxu0 0.0
      %864 = vmatmul.mubr.f32.gmra.mxu0 %v659
      %v865 = vpop.f32.mrf.mxu0
      %v866 = vadd.f32 %v542, %v865
      %v867 = vpop.f32.mrf.mxu0
      %868 = vmatprep.mubr.f32.mxu0 0.0
      %869 = vmatmul.mubr.f32.gmra.mxu0 %v662
      %v870 = vpop.f32.mrf.mxu0
      %v871 = vadd.f32 %v547, %v870
      %v872 = vpop.f32.mrf.mxu0
      %873 = vmatprep.mubr.f32.mxu0 0.0
      %874 = vmatmul.mubr.f32.gmra.mxu0 %v665
      %v875 = vpop.f32.mrf.mxu0
      %v876 = vadd.f32 %v552, %v875
      %v877 = vpop.f32.mrf.mxu0
      %878 = vmatprep.mubr.f32.mxu0 0.0
      %879 = vmatmul.mubr.f32.gmra.mxu0 %v668
      %v880 = vpop.f32.mrf.mxu0
      %v881 = vadd.f32 %v557, %v880
      %v882 = vpop.f32.mrf.mxu0
      %883 = vmatprep.mubr.f32.mxu0 0.0
      %884 = vmatmul.mubr.f32.gmra.mxu0 %v671
      %v885 = vpop.f32.mrf.mxu0
      %v886 = vadd.f32 %v562, %v885
      %v887 = vpop.f32.mrf.mxu0
      %888 = vmatprep.mubr.f32.mxu0 0.0
      %889 = vmatmul.mubr.f32.gmra.mxu0 %v674
      %v890 = vpop.f32.mrf.mxu0
      %v891 = vadd.f32 %v567, %v890
      %v892 = vpop.f32.mrf.mxu0
      %893 = vmatprep.mubr.f32.mxu0 0.0
      %894 = vmatmul.mubr.f32.gmra.mxu0 %v677
      %v895 = vpop.f32.mrf.mxu0
      %v896 = vadd.f32 %v572, %v895
      %v897 = vpop.f32.mrf.mxu0
      %898 = vmatprep.mubr.f32.mxu0 0.0
      %899 = vmatmul.mubr.f32.gmra.mxu0 %v680
      %v900 = vpop.f32.mrf.mxu0
      %v901 = vadd.f32 %v577, %v900
      %v902 = vpop.f32.mrf.mxu0
      %903 = vmatprep.mubr.f32.mxu0 0.0
      %904 = vmatmul.mubr.f32.gmra.mxu0 %v683
      %v905 = vpop.f32.mrf.mxu0
      %v906 = vadd.f32 %v582, %v905
      %v907 = vpop.f32.mrf.mxu0
      %908 = vmatprep.mubr.f32.mxu0 0.0
      %909 = vmatmul.mubr.f32.gmra.mxu0 %v686
      %v910 = vpop.f32.mrf.mxu0
      %v911 = vadd.f32 %v587, %v910
      %v912 = vpop.f32.mrf.mxu0
      %913 = vmatprep.mubr.f32.mxu0 0.0
      %914 = vmatmul.mubr.f32.gmra.mxu0 %v689
      %v915 = vpop.f32.mrf.mxu0
      %v916 = vadd.f32 %v592, %v915
      %v917 = vpop.f32.mrf.mxu0
      %918 = vdwg.mxu0
      %s919 = sadd.s32 %s194, 2
      %s920 = smul.u32 %s919, 16
      %s921 = scalar_lea.vmem %s183, %s920
      %v922 = vld [vmem:[%s921] sm:$0xff]
      %v923 = vld [vmem:[%s921 + $0x8] sm:$0xff]
      %v924 = vld [vmem:[%s921 + $0x10] sm:$0xff]
      %v925 = vld [vmem:[%s921 + $0x18] sm:$0xff]
      %v926 = vld [vmem:[%s921 + $0x20] sm:$0xff]
      %v927 = vld [vmem:[%s921 + $0x28] sm:$0xff]
      %v928 = vld [vmem:[%s921 + $0x30] sm:$0xff]
      %v929 = vld [vmem:[%s921 + $0x38] sm:$0xff]
      %v930 = vld [vmem:[%s921 + $0x40] sm:$0xff]
      %v931 = vld [vmem:[%s921 + $0x48] sm:$0xff]
      %v932 = vld [vmem:[%s921 + $0x50] sm:$0xff]
      %v933 = vld [vmem:[%s921 + $0x58] sm:$0xff]
      %v934 = vld [vmem:[%s921 + $0x60] sm:$0xff]
      %v935 = vld [vmem:[%s921 + $0x68] sm:$0xff]
      %v936 = vld [vmem:[%s921 + $0x70] sm:$0xff]
      %v937 = vld [vmem:[%s921 + $0x78] sm:$0xff]
      %v938 = vld [vmem:[%s921 + $0x80] sm:$0xff]
      %v939 = vld [vmem:[%s921 + $0x88] sm:$0xff]
      %v940 = vld [vmem:[%s921 + $0x90] sm:$0xff]
      %v941 = vld [vmem:[%s921 + $0x98] sm:$0xff]
      %v942 = vld [vmem:[%s921 + $0xa0] sm:$0xff]
      %v943 = vld [vmem:[%s921 + $0xa8] sm:$0xff]
      %v944 = vld [vmem:[%s921 + $0xb0] sm:$0xff]
      %v945 = vld [vmem:[%s921 + $0xb8] sm:$0xff]
      %v946 = vld [vmem:[%s921 + $0xc0] sm:$0xff]
      %v947 = vld [vmem:[%s921 + $0xc8] sm:$0xff]
      %v948 = vld [vmem:[%s921 + $0xd0] sm:$0xff]
      %v949 = vld [vmem:[%s921 + $0xd8] sm:$0xff]
      %v950 = vld [vmem:[%s921 + $0xe0] sm:$0xff]
      %v951 = vld [vmem:[%s921 + $0xe8] sm:$0xff]
      %v952 = vld [vmem:[%s921 + $0xf0] sm:$0xff]
      %v953 = vld [vmem:[%s921 + $0xf8] sm:$0xff]
      %s954 = scalar_lea.vmem %s1, 32
      %v955 = vld [vmem:[%s954] sm:$0xff]
      %v956 = vld [vmem:[%s954 + $0x8] sm:$0xf]
      %v958 = vsel %vm269, %v922, 0
      %v961 = vsel %vm269, %v923, 0
      %v964 = vsel %vm269, %v924, 0
      %v967 = vsel %vm269, %v925, 0
      %v970 = vsel %vm269, %v926, 0
      %v973 = vsel %vm269, %v927, 0
      %v976 = vsel %vm269, %v928, 0
      %v979 = vsel %vm269, %v929, 0
      %v982 = vsel %vm269, %v930, 0
      %v985 = vsel %vm269, %v931, 0
      %v988 = vsel %vm269, %v932, 0
      %v991 = vsel %vm269, %v933, 0
      %v994 = vsel %vm269, %v934, 0
      %v997 = vsel %vm269, %v935, 0
      %v1000 = vsel %vm269, %v936, 0
      %v1003 = vsel %vm269, %v937, 0
      %v1006 = vsel %vm269, %v938, 0
      %v1009 = vsel %vm269, %v939, 0
      %v1012 = vsel %vm269, %v940, 0
      %v1015 = vsel %vm269, %v941, 0
      %v1018 = vsel %vm269, %v942, 0
      %v1021 = vsel %vm269, %v943, 0
      %v1024 = vsel %vm269, %v944, 0
      %v1027 = vsel %vm269, %v945, 0
      %v1030 = vsel %vm269, %v946, 0
      %v1033 = vsel %vm269, %v947, 0
      %v1036 = vsel %vm269, %v948, 0
      %v1039 = vsel %vm269, %v949, 0
      %v1042 = vsel %vm269, %v950, 0
      %v1045 = vsel %vm269, %v951, 0
      %v1048 = vsel %vm269, %v952, 0
      %v1051 = vsel %vm269, %v953, 0
      %v1054 = vsel %vm366, %v956, 0
      %1056 = vmatprep.subr.mxu0 0.0
      %1057 = vmatpush1.msra.mxu0 0.0
      %1058 = vmatprep.subr.mxu0 0.0
      %1059 = vmatpush1.msra.mxu0 0.0
      %1060 = vmatprep.subr.mxu0 0.0
      %1061 = vmatpush1.msra.mxu0 0.0
      %1062 = vmatprep.subr.mxu0 0.0
      %1063 = vmatpush1.msra.mxu0 0.0
      %1064 = vmatprep.subr.mxu0 0.0
      %1065 = vmatpush1.msra.mxu0 0.0
      %1066 = vmatprep.subr.mxu0 0.0
      %1067 = vmatpush1.msra.mxu0 0.0
      %1068 = vmatprep.subr.mxu0 0.0
      %1069 = vmatpush1.msra.mxu0 0.0
      %1070 = vmatprep.subr.mxu0 0.0
      %1071 = vmatpush1.msra.mxu0 0.0
      %1072 = vmatprep.subr.mxu0 0.0
      %1073 = vmatpush1.msra.mxu0 0.0
      %1074 = vmatprep.subr.mxu0 0.0
      %1075 = vmatpush1.msra.mxu0 0.0
      %1076 = vmatprep.subr.mxu0 0.0
      %1077 = vmatpush1.msra.mxu0 0.0
      %1078 = vmatprep.subr.mxu0 0.0
      %1079 = vmatpush1.msra.mxu0 0.0
      %1080 = vmatprep.subr.mxu0 0.0
      %1081 = vmatpush1.msra.mxu0 0.0
      %1082 = vmatprep.subr.mxu0 0.0
      %1083 = vmatpush1.msra.mxu0 0.0
      %1084 = vmatprep.subr.mxu0 0.0
      %1085 = vmatpush1.msra.mxu0 %v1054
      %1086 = vmatprep.subr.mxu0 0.0
      %1087 = vmatpush1.msra.mxu0 %v955
      %1088 = vmatprep.subr.mxu0 0.0
      %1089 = vmatpush2.msra.mxu0 0.0
      %1090 = vmatprep.subr.mxu0 0.0
      %1091 = vmatpush2.msra.mxu0 0.0
      %1092 = vmatprep.subr.mxu0 0.0
      %1093 = vmatpush2.msra.mxu0 0.0
      %1094 = vmatprep.subr.mxu0 0.0
      %1095 = vmatpush2.msra.mxu0 0.0
      %1096 = vmatprep.subr.mxu0 0.0
      %1097 = vmatpush2.msra.mxu0 0.0
      %1098 = vmatprep.subr.mxu0 0.0
      %1099 = vmatpush2.msra.mxu0 0.0
      %1100 = vmatprep.subr.mxu0 0.0
      %1101 = vmatpush2.msra.mxu0 0.0
      %1102 = vmatprep.subr.mxu0 0.0
      %1103 = vmatpush2.msra.mxu0 0.0
      %1104 = vmatprep.subr.mxu0 0.0
      %1105 = vmatpush2.msra.mxu0 0.0
      %1106 = vmatprep.subr.mxu0 0.0
      %1107 = vmatpush2.msra.mxu0 0.0
      %1108 = vmatprep.subr.mxu0 0.0
      %1109 = vmatpush2.msra.mxu0 0.0
      %1110 = vmatprep.subr.mxu0 0.0
      %1111 = vmatpush2.msra.mxu0 0.0
      %1112 = vmatprep.subr.mxu0 0.0
      %1113 = vmatpush2.msra.mxu0 0.0
      %1114 = vmatprep.subr.mxu0 0.0
      %1115 = vmatpush2.msra.mxu0 0.0
      %1116 = vmatprep.subr.mxu0 0.0
      %1117 = vmatpush2.msra.mxu0 0.0
      %1118 = vmatprep.subr.mxu0 0.0
      %1119 = vmatpush2.msra.mxu0 0.0
      %1120 = vmatprep.mubr.f32.mxu0 0.0
      %1121 = vmatmul.mubr.f32.gmra.mxu0 %v958
      %v1122 = vpop.f32.mrf.mxu0
      %v1123 = vadd.f32 0.0, %v1122
      %v1124 = vpop.f32.mrf.mxu0
      %1125 = vmatprep.mubr.f32.mxu0 0.0
      %1126 = vmatmul.mubr.f32.gmra.mxu0 %v961
      %v1127 = vpop.f32.mrf.mxu0
      %v1128 = vadd.f32 0.0, %v1127
      %v1129 = vpop.f32.mrf.mxu0
      %1130 = vmatprep.mubr.f32.mxu0 0.0
      %1131 = vmatmul.mubr.f32.gmra.mxu0 %v964
      %v1132 = vpop.f32.mrf.mxu0
      %v1133 = vadd.f32 0.0, %v1132
      %v1134 = vpop.f32.mrf.mxu0
      %1135 = vmatprep.mubr.f32.mxu0 0.0
      %1136 = vmatmul.mubr.f32.gmra.mxu0 %v967
      %v1137 = vpop.f32.mrf.mxu0
      %v1138 = vadd.f32 0.0, %v1137
      %v1139 = vpop.f32.mrf.mxu0
      %1140 = vmatprep.mubr.f32.mxu0 0.0
      %1141 = vmatmul.mubr.f32.gmra.mxu0 %v970
      %v1142 = vpop.f32.mrf.mxu0
      %v1143 = vadd.f32 0.0, %v1142
      %v1144 = vpop.f32.mrf.mxu0
      %1145 = vmatprep.mubr.f32.mxu0 0.0
      %1146 = vmatmul.mubr.f32.gmra.mxu0 %v973
      %v1147 = vpop.f32.mrf.mxu0
      %v1148 = vadd.f32 0.0, %v1147
      %v1149 = vpop.f32.mrf.mxu0
      %1150 = vmatprep.mubr.f32.mxu0 0.0
      %1151 = vmatmul.mubr.f32.gmra.mxu0 %v976
      %v1152 = vpop.f32.mrf.mxu0
      %v1153 = vadd.f32 0.0, %v1152
      %v1154 = vpop.f32.mrf.mxu0
      %1155 = vmatprep.mubr.f32.mxu0 0.0
      %1156 = vmatmul.mubr.f32.gmra.mxu0 %v979
      %v1157 = vpop.f32.mrf.mxu0
      %v1158 = vadd.f32 0.0, %v1157
      %v1159 = vpop.f32.mrf.mxu0
      %1160 = vmatprep.mubr.f32.mxu0 0.0
      %1161 = vmatmul.mubr.f32.gmra.mxu0 %v982
      %v1162 = vpop.f32.mrf.mxu0
      %v1163 = vadd.f32 0.0, %v1162
      %v1164 = vpop.f32.mrf.mxu0
      %1165 = vmatprep.mubr.f32.mxu0 0.0
      %1166 = vmatmul.mubr.f32.gmra.mxu0 %v985
      %v1167 = vpop.f32.mrf.mxu0
      %v1168 = vadd.f32 0.0, %v1167
      %v1169 = vpop.f32.mrf.mxu0
      %1170 = vmatprep.mubr.f32.mxu0 0.0
      %1171 = vmatmul.mubr.f32.gmra.mxu0 %v988
      %v1172 = vpop.f32.mrf.mxu0
      %v1173 = vadd.f32 0.0, %v1172
      %v1174 = vpop.f32.mrf.mxu0
      %1175 = vmatprep.mubr.f32.mxu0 0.0
      %1176 = vmatmul.mubr.f32.gmra.mxu0 %v991
      %v1177 = vpop.f32.mrf.mxu0
      %v1178 = vadd.f32 0.0, %v1177
      %v1179 = vpop.f32.mrf.mxu0
      %1180 = vmatprep.mubr.f32.mxu0 0.0
      %1181 = vmatmul.mubr.f32.gmra.mxu0 %v994
      %v1182 = vpop.f32.mrf.mxu0
      %v1183 = vadd.f32 0.0, %v1182
      %v1184 = vpop.f32.mrf.mxu0
      %1185 = vmatprep.mubr.f32.mxu0 0.0
      %1186 = vmatmul.mubr.f32.gmra.mxu0 %v997
      %v1187 = vpop.f32.mrf.mxu0
      %v1188 = vadd.f32 0.0, %v1187
      %v1189 = vpop.f32.mrf.mxu0
      %1190 = vmatprep.mubr.f32.mxu0 0.0
      %1191 = vmatmul.mubr.f32.gmra.mxu0 %v1000
      %v1192 = vpop.f32.mrf.mxu0
      %v1193 = vadd.f32 0.0, %v1192
      %v1194 = vpop.f32.mrf.mxu0
      %1195 = vmatprep.mubr.f32.mxu0 0.0
      %1196 = vmatmul.mubr.f32.gmra.mxu0 %v1003
      %v1197 = vpop.f32.mrf.mxu0
      %v1198 = vadd.f32 0.0, %v1197
      %v1199 = vpop.f32.mrf.mxu0
      %1200 = vmatprep.mubr.f32.mxu0 0.0
      %1201 = vmatmul.mubr.f32.gmra.mxu0 %v1006
      %v1202 = vpop.f32.mrf.mxu0
      %v1203 = vadd.f32 0.0, %v1202
      %v1204 = vpop.f32.mrf.mxu0
      %1205 = vmatprep.mubr.f32.mxu0 0.0
      %1206 = vmatmul.mubr.f32.gmra.mxu0 %v1009
      %v1207 = vpop.f32.mrf.mxu0
      %v1208 = vadd.f32 0.0, %v1207
      %v1209 = vpop.f32.mrf.mxu0
      %1210 = vmatprep.mubr.f32.mxu0 0.0
      %1211 = vmatmul.mubr.f32.gmra.mxu0 %v1012
      %v1212 = vpop.f32.mrf.mxu0
      %v1213 = vadd.f32 0.0, %v1212
      %v1214 = vpop.f32.mrf.mxu0
      %1215 = vmatprep.mubr.f32.mxu0 0.0
      %1216 = vmatmul.mubr.f32.gmra.mxu0 %v1015
      %v1217 = vpop.f32.mrf.mxu0
      %v1218 = vadd.f32 0.0, %v1217
      %v1219 = vpop.f32.mrf.mxu0
      %1220 = vmatprep.mubr.f32.mxu0 0.0
      %1221 = vmatmul.mubr.f32.gmra.mxu0 %v1018
      %v1222 = vpop.f32.mrf.mxu0
      %v1223 = vadd.f32 0.0, %v1222
      %v1224 = vpop.f32.mrf.mxu0
      %1225 = vmatprep.mubr.f32.mxu0 0.0
      %1226 = vmatmul.mubr.f32.gmra.mxu0 %v1021
      %v1227 = vpop.f32.mrf.mxu0
      %v1228 = vadd.f32 0.0, %v1227
      %v1229 = vpop.f32.mrf.mxu0
      %1230 = vmatprep.mubr.f32.mxu0 0.0
      %1231 = vmatmul.mubr.f32.gmra.mxu0 %v1024
      %v1232 = vpop.f32.mrf.mxu0
      %v1233 = vadd.f32 0.0, %v1232
      %v1234 = vpop.f32.mrf.mxu0
      %1235 = vmatprep.mubr.f32.mxu0 0.0
      %1236 = vmatmul.mubr.f32.gmra.mxu0 %v1027
      %v1237 = vpop.f32.mrf.mxu0
      %v1238 = vadd.f32 0.0, %v1237
      %v1239 = vpop.f32.mrf.mxu0
      %1240 = vmatprep.mubr.f32.mxu0 0.0
      %1241 = vmatmul.mubr.f32.gmra.mxu0 %v1030
      %v1242 = vpop.f32.mrf.mxu0
      %v1243 = vadd.f32 0.0, %v1242
      %v1244 = vpop.f32.mrf.mxu0
      %1245 = vmatprep.mubr.f32.mxu0 0.0
      %1246 = vmatmul.mubr.f32.gmra.mxu0 %v1033
      %v1247 = vpop.f32.mrf.mxu0
      %v1248 = vadd.f32 0.0, %v1247
      %v1249 = vpop.f32.mrf.mxu0
      %1250 = vmatprep.mubr.f32.mxu0 0.0
      %1251 = vmatmul.mubr.f32.gmra.mxu0 %v1036
      %v1252 = vpop.f32.mrf.mxu0
      %v1253 = vadd.f32 0.0, %v1252
      %v1254 = vpop.f32.mrf.mxu0
      %1255 = vmatprep.mubr.f32.mxu0 0.0
      %1256 = vmatmul.mubr.f32.gmra.mxu0 %v1039
      %v1257 = vpop.f32.mrf.mxu0
      %v1258 = vadd.f32 0.0, %v1257
      %v1259 = vpop.f32.mrf.mxu0
      %1260 = vmatprep.mubr.f32.mxu0 0.0
      %1261 = vmatmul.mubr.f32.gmra.mxu0 %v1042
      %v1262 = vpop.f32.mrf.mxu0
      %v1263 = vadd.f32 0.0, %v1262
      %v1264 = vpop.f32.mrf.mxu0
      %1265 = vmatprep.mubr.f32.mxu0 0.0
      %1266 = vmatmul.mubr.f32.gmra.mxu0 %v1045
      %v1267 = vpop.f32.mrf.mxu0
      %v1268 = vadd.f32 0.0, %v1267
      %v1269 = vpop.f32.mrf.mxu0
      %1270 = vmatprep.mubr.f32.mxu0 0.0
      %1271 = vmatmul.mubr.f32.gmra.mxu0 %v1048
      %v1272 = vpop.f32.mrf.mxu0
      %v1273 = vadd.f32 0.0, %v1272
      %v1274 = vpop.f32.mrf.mxu0
      %1275 = vmatprep.mubr.f32.mxu0 0.0
      %1276 = vmatmul.mubr.f32.gmra.mxu0 %v1051
      %v1277 = vpop.f32.mrf.mxu0
      %v1278 = vadd.f32 0.0, %v1277
      %v1279 = vpop.f32.mrf.mxu0
      %1280 = vdwg.mxu0
      %v1281 = vadd.f32 %v761, %v1123
      %v1282 = vadd.f32 %v766, %v1128
      %v1283 = vadd.f32 %v771, %v1133
      %v1284 = vadd.f32 %v776, %v1138
      %v1285 = vadd.f32 %v781, %v1143
      %v1286 = vadd.f32 %v786, %v1148
      %v1287 = vadd.f32 %v791, %v1153
      %v1288 = vadd.f32 %v796, %v1158
      %v1289 = vadd.f32 %v801, %v1163
      %v1290 = vadd.f32 %v806, %v1168
      %v1291 = vadd.f32 %v811, %v1173
      %v1292 = vadd.f32 %v816, %v1178
      %v1293 = vadd.f32 %v821, %v1183
      %v1294 = vadd.f32 %v826, %v1188
      %v1295 = vadd.f32 %v831, %v1193
      %v1296 = vadd.f32 %v836, %v1198
      %v1297 = vadd.f32 %v841, %v1203
      %v1298 = vadd.f32 %v846, %v1208
      %v1299 = vadd.f32 %v851, %v1213
      %v1300 = vadd.f32 %v856, %v1218
      %v1301 = vadd.f32 %v861, %v1223
      %v1302 = vadd.f32 %v866, %v1228
      %v1303 = vadd.f32 %v871, %v1233
      %v1304 = vadd.f32 %v876, %v1238
      %v1305 = vadd.f32 %v881, %v1243
      %v1306 = vadd.f32 %v886, %v1248
      %v1307 = vadd.f32 %v891, %v1253
      %v1308 = vadd.f32 %v896, %v1258
      %v1309 = vadd.f32 %v901, %v1263
      %v1310 = vadd.f32 %v906, %v1268
      %v1311 = vadd.f32 %v911, %v1273
      %v1312 = vadd.f32 %v916, %v1278
      %v1313 = vld [vmem:[%s2] sm:$0x1]
      %v1315 = vlaneseq
      %v1316 = vshrl.u32 %v1315, 7
      %v1317 = vsub.s32 0, %v1316
      %v1318 = vrot.slane %v1313, %v1317
      %v1320 = vadd.f32 %v1281, %v1318
      %v1321 = vadd.f32 %v1282, %v1318
      %v1322 = vadd.f32 %v1283, %v1318
      %v1323 = vadd.f32 %v1284, %v1318
      %v1324 = vadd.f32 %v1285, %v1318
      %v1325 = vadd.f32 %v1286, %v1318
      %v1326 = vadd.f32 %v1287, %v1318
      %v1327 = vadd.f32 %v1288, %v1318
      %v1328 = vadd.f32 %v1289, %v1318
      %v1329 = vadd.f32 %v1290, %v1318
      %v1330 = vadd.f32 %v1291, %v1318
      %v1331 = vadd.f32 %v1292, %v1318
      %v1332 = vadd.f32 %v1293, %v1318
      %v1333 = vadd.f32 %v1294, %v1318
      %v1334 = vadd.f32 %v1295, %v1318
      %v1335 = vadd.f32 %v1296, %v1318
      %v1336 = vadd.f32 %v1297, %v1318
      %v1337 = vadd.f32 %v1298, %v1318
      %v1338 = vadd.f32 %v1299, %v1318
      %v1339 = vadd.f32 %v1300, %v1318
      %v1340 = vadd.f32 %v1301, %v1318
      %v1341 = vadd.f32 %v1302, %v1318
      %v1342 = vadd.f32 %v1303, %v1318
      %v1343 = vadd.f32 %v1304, %v1318
      %v1344 = vadd.f32 %v1305, %v1318
      %v1345 = vadd.f32 %v1306, %v1318
      %v1346 = vadd.f32 %v1307, %v1318
      %v1347 = vadd.f32 %v1308, %v1318
      %v1348 = vadd.f32 %v1309, %v1318
      %v1349 = vadd.f32 %v1310, %v1318
      %v1350 = vadd.f32 %v1311, %v1318
      %v1351 = vadd.f32 %v1312, %v1318
      %1352 = vst [vmem:[%s192] sm:$0xff] %v1320
      %1353 = vst [vmem:[%s192 + $0x8] sm:$0xff] %v1321
      %1354 = vst [vmem:[%s192 + $0x10] sm:$0xff] %v1322
      %1355 = vst [vmem:[%s192 + $0x18] sm:$0xff] %v1323
      %1356 = vst [vmem:[%s192 + $0x20] sm:$0xff] %v1324
      %1357 = vst [vmem:[%s192 + $0x28] sm:$0xff] %v1325
      %1358 = vst [vmem:[%s192 + $0x30] sm:$0xff] %v1326
      %1359 = vst [vmem:[%s192 + $0x38] sm:$0xff] %v1327
      %1360 = vst [vmem:[%s192 + $0x40] sm:$0xff] %v1328
      %1361 = vst [vmem:[%s192 + $0x48] sm:$0xff] %v1329
      %1362 = vst [vmem:[%s192 + $0x50] sm:$0xff] %v1330
      %1363 = vst [vmem:[%s192 + $0x58] sm:$0xff] %v1331
      %1364 = vst [vmem:[%s192 + $0x60] sm:$0xff] %v1332
      %1365 = vst [vmem:[%s192 + $0x68] sm:$0xff] %v1333
      %1366 = vst [vmem:[%s192 + $0x70] sm:$0xff] %v1334
      %1367 = vst [vmem:[%s192 + $0x78] sm:$0xff] %v1335
      %1368 = vst [vmem:[%s192 + $0x80] sm:$0xff] %v1336
      %1369 = vst [vmem:[%s192 + $0x88] sm:$0xff] %v1337
      %1370 = vst [vmem:[%s192 + $0x90] sm:$0xff] %v1338
      %1371 = vst [vmem:[%s192 + $0x98] sm:$0xff] %v1339
      %1372 = vst [vmem:[%s192 + $0xa0] sm:$0xff] %v1340
      %1373 = vst [vmem:[%s192 + $0xa8] sm:$0xff] %v1341
      %1374 = vst [vmem:[%s192 + $0xb0] sm:$0xff] %v1342
      %1375 = vst [vmem:[%s192 + $0xb8] sm:$0xff] %v1343
      %1376 = vst [vmem:[%s192 + $0xc0] sm:$0xff] %v1344
      %1377 = vst [vmem:[%s192 + $0xc8] sm:$0xff] %v1345
      %1378 = vst [vmem:[%s192 + $0xd0] sm:$0xff] %v1346
      %1379 = vst [vmem:[%s192 + $0xd8] sm:$0xff] %v1347
      %1380 = vst [vmem:[%s192 + $0xe0] sm:$0xff] %v1348
      %1381 = vst [vmem:[%s192 + $0xe8] sm:$0xff] %v1349
      %1382 = vst [vmem:[%s192 + $0xf0] sm:$0xff] %v1350
      %1383 = vst [vmem:[%s192 + $0xf8] sm:$0xff] %v1351
      %s1384 = smul.u32 32, %s19
      %p1385 = scmp.lt.s32.totalorder %s18, 1
      %s1386 = scalar_select %p1385, %s18, 1
      %p1387 = scmp.lt.s32.totalorder %s1384, 31
      %s1388 = scalar_select %p1387, %s1384, 31
      %s1389 = smul.addr %s1386, 32
      %s1390 = sadd.s32 %s1388, %s1389
      %s1391 = smul.addr %s1390, 8
      %s1392 = scalar_lea.vmem %s3, %s1391
      // Predicated region
      $region33: #{_position_conv2d_impl.1} parent=31 // pred_check
        %p1393 = pneg %p114
      $region34: #{_position_conv2d_impl.1} parent=31 // pred_check_branch
        %1395 = sbr.rel (%p1393) target = $region36
      $region35: #{_position_conv2d_impl.1} parent=31 // pred_region
        %s1396 = smul.u32 32, %s19
      $region36: #{_position_conv2d_impl.1} parent=31 // pred_fallthru
        _
    $region32: #{_position_conv2d_impl.1} parent=5 // pred_fallthru
      _
    %p1397 = scmp.le.s32.totalorder 2, %s9
    // Predicated region
    $region37: #{_position_conv2d_impl.1} parent=5 // pred_check
      %p1398 = pneg %p1397
    $region38: #{_position_conv2d_impl.1} parent=5 // pred_check_branch
      %1400 = sbr.rel (%p1398) target = $region40
    $region39: #{_position_conv2d_impl.1} parent=5 // pred_region
      %s1401 = ssub.s32 %s9, 2
      // Predicated region
      $region41: #{_position_conv2d_impl.1} parent=39 // pred_check
        %p1402 = pneg %p120
      $region42: #{_position_conv2d_impl.1} parent=39 // pred_check_branch
        %1404 = sbr.rel (%p1402) target = $region44
      $region43: #{_position_conv2d_impl.1} parent=39 // pred_region
        %s1405 = smul.u32 32, %s21
        %p1406 = scmp.lt.s32.totalorder %s20, 1
        %s1407 = scalar_select %p1406, %s20, 1
        %p1408 = scmp.lt.s32.totalorder %s1405, 31
        %s1409 = scalar_select %p1408, %s1405, 31
        %s1410 = smul.addr %s1407, 32
        %s1411 = sadd.s32 %s1409, %s1410
        %s1412 = smul.addr %s1411, 8
        %s1413 = scalar_lea.vmem %s3, %s1412
      $region44: #{_position_conv2d_impl.1} parent=39 // pred_fallthru
        _
    $region40: #{_position_conv2d_impl.1} parent=5 // pred_fallthru
      _
  $region6: #{_position_conv2d_impl.1} parent=0 // loop_footer
    %s13 = sadd.s32 1, %s9
  $region7: #{_position_conv2d_impl.1} parent=0 // loop_footer_branch
    %8 = sbr.rel target = $region3
  $region8: #{_position_conv2d_impl.1} parent=0 // loop_exit
    _

// kernel: _position_conv2d_impl.1
$region0: #{_position_conv2d_impl.1}
  #allocation0 [shape = 'u32[]', space=smem, size = 0x4, offset = 0x4, fixed_abs, tag = 'smem constant byte address 0x4 - core index']
  #allocation1 [shape = 'u32[144,128]{1,0:T(1,128)}', space=vmem, size = 0x12000, scoped, tag = 'internal scratch']
  %s0 = inlined_call_operand.vmem [shape: f32[2,288,12], index: 0, kind: input, shape index: {}]
  %s1 = inlined_call_operand.vmem [shape: f32[3,12,128], index: 1, kind: input, shape index: {}]
  %s2 = inlined_call_operand.vmem [shape: f32[1,128], index: 2, kind: input, shape index: {}]
  %s3 = inlined_call_operand.vmem [shape: f32[2,256,128], index: 3, kind: output, shape index: {}]
  %s4 = sld [smem:[#allocation0]]
  $region45: #{_position_conv2d_impl.1} parent=0
    _
  %s6 = ssub.s32 1, %s4
  %s7 = scalar_select 0, %s6, %s4
  loop: start=0, step=1, limit=4
  $region2: #{_position_conv2d_impl.1} parent=0 // loop_pre_header
    _
  $region3: #{_position_conv2d_impl.1} parent=0 // loop_header
    %s9 = sphi 0, %s13
    %p10 = scmp.ge.s32.totalorder %s9, 4
    %s16 = sphi 0, %s28
    %s17 = sphi 0, %s24
    %s18 = sphi 0, %s16
    %s19 = sphi 0, %s17
    %s20 = sphi 0, %s18
    %s21 = sphi 0, %s19
    %s31 = sphi 0, %s33
    %s34 = sphi 0, %s31
    %s35 = sphi 0, %s34
    %s51 = sphi 0, %s35
    %s55 = sphi 0, %s55
    %s57 = sphi 0, %s55
    %s58 = sphi 0, %s57
    %s72 = sphi 0, %s58
    %s76 = sphi 0, %s76
    %s78 = sphi 0, %s76
    %s79 = sphi 0, %s78
    %s93 = sphi 0, %s79
    %s101 = sphi 0, %s103
    %s104 = sphi 0, %s101
    %s105 = sphi 0, %s104
    %s121 = sphi 0, %s105
  $region4: #{_position_conv2d_impl.1} parent=0 // loop_header_branch
    %12 = sbr.rel (%p10) target = $region8
  $region5: #{_position_conv2d_impl.1} parent=0 // loop_body
    %s14 = ssub.s32 %s9, 1
    %s15 = ssub.s32 %s9, 2
    %s22 = sadd.s32 1, %s17
    %p23 = scmp.ge.s32.totalorder %s22, 1
    %s24 = scalar_select %p23, 0, %s22
    %s25 = sadd.s32 1, %s16
    %s26 = scalar_select %p23, %s25, %s16
    %p27 = scmp.ge.s32.totalorder %s26, 2
    %s28 = scalar_select %p27, 0, %s26
    %s29 = ssub.s32 %s16, %s28
    %p30 = scmp.eq.s32.totalorder %s29, 0
    %s32 = sadd.s32 %s31, 1
    %s33 = scalar_select %p30, %s31, %s32
    %p36 = pneg %p30
    %p37 = scmp.eq.s32.totalorder %s9, 1
    %p38 = por %p36, %p37
    %p39 = scmp.ne.s32.totalorder %s31, %s34
    %p40 = scmp.eq.s32.totalorder %s9, 0
    %p41 = por %p39, %p40
    %p42 = scmp.ne.s32.totalorder %s31, %s34
    %p43 = scmp.eq.s32.totalorder %s14, 1
    %p44 = por %p42, %p43
    %p45 = scmp.ne.s32.totalorder %s34, %s35
    %p46 = scmp.eq.s32.totalorder %s14, 0
    %p47 = por %p45, %p46
    %p48 = scmp.ne.s32.totalorder %s34, %s35
    %p49 = scmp.eq.s32.totalorder %s15, 1
    %p50 = por %p48, %p49
    %p52 = scmp.ne.s32.totalorder %s35, %s51
    %p53 = scmp.eq.s32.totalorder %s15, 0
    %p54 = por %p52, %p53
    %s56 = sadd.s32 %s55, 1
    %p59 = scmp.eq.s32.totalorder %s9, 1
    %p60 = scmp.ne.s32.totalorder %s55, %s57
    %p61 = scmp.eq.s32.totalorder %s9, 0
    %p62 = por %p60, %p61
    %p63 = scmp.ne.s32.totalorder %s55, %s57
    %p64 = scmp.eq.s32.totalorder %s14, 1
    %p65 = por %p63, %p64
    %p66 = scmp.ne.s32.totalorder %s57, %s58
    %p67 = scmp.eq.s32.totalorder %s14, 0
    %p68 = por %p66, %p67
    %p69 = scmp.ne.s32.totalorder %s57, %s58
    %p70 = scmp.eq.s32.totalorder %s15, 1
    %p71 = por %p69, %p70
    %p73 = scmp.ne.s32.totalorder %s58, %s72
    %p74 = scmp.eq.s32.totalorder %s15, 0
    %p75 = por %p73, %p74
    %s77 = sadd.s32 %s76, 1
    %p80 = scmp.eq.s32.totalorder %s9, 1
    %p81 = scmp.ne.s32.totalorder %s76, %s78
    %p82 = scmp.eq.s32.totalorder %s9, 0
    %p83 = por %p81, %p82
    %p84 = scmp.ne.s32.totalorder %s76, %s78
    %p85 = scmp.eq.s32.totalorder %s14, 1
    %p86 = por %p84, %p85
    %p87 = scmp.ne.s32.totalorder %s78, %s79
    %p88 = scmp.eq.s32.totalorder %s14, 0
    %p89 = por %p87, %p88
    %p90 = scmp.ne.s32.totalorder %s78, %s79
    %p91 = scmp.eq.s32.totalorder %s15, 1
    %p92 = por %p90, %p91
    %p94 = scmp.ne.s32.totalorder %s79, %s93
    %p95 = scmp.eq.s32.totalorder %s15, 0
    %p96 = por %p94, %p95
    %s97 = ssub.s32 %s16, %s28
    %s98 = ssub.s32 %s17, %s24
    %s99 = sor.u32 %s97, %s98
    %p100 = scmp.eq.s32.totalorder %s99, 0
    %s102 = sadd.s32 %s101, 1
    %s103 = scalar_select %p100, %s101, %s102
    %p106 = pneg %p100
    %p107 = scmp.eq.s32.totalorder %s9, 1
    %p108 = por %p106, %p107
    %p109 = scmp.ne.s32.totalorder %s101, %s104
    %p110 = scmp.eq.s32.totalorder %s9, 0
    %p111 = por %p109, %p110
    %p112 = scmp.ne.s32.totalorder %s101, %s104
    %p113 = scmp.eq.s32.totalorder %s14, 1
    %p114 = por %p112, %p113
    %p115 = scmp.ne.s32.totalorder %s104, %s105
    %p116 = scmp.eq.s32.totalorder %s14, 0
    %p117 = por %p115, %p116
    %p118 = scmp.ne.s32.totalorder %s104, %s105
    %p119 = scmp.eq.s32.totalorder %s15, 1
    %p120 = por %p118, %p119
    %p122 = scmp.ne.s32.totalorder %s105, %s121
    %p123 = scmp.eq.s32.totalorder %s15, 0
    %p124 = por %p122, %p123
    %p125 = scmp.le.s32.totalorder 1, %s9
    %p126 = scmp.lt.s32.totalorder %s9, 3
    %p127 = pnand %p125, %p126
    %p128 = pneg %p127
    // Predicated region
    $region9: #{_position_conv2d_impl.1} parent=5 // pred_check
      _
    $region10: #{_position_conv2d_impl.1} parent=5 // pred_check_branch
      %130 = sbr.rel (%p127) target = $region12
    $region11: #{_position_conv2d_impl.1} parent=5 // pred_region
      %s131 = ssub.s32 %s9, 1
      // Predicated region
      $region13: #{_position_conv2d_impl.1} parent=11 // pred_check
        %p132 = pneg %p68
      $region14: #{_position_conv2d_impl.1} parent=11 // pred_check_branch
        %134 = sbr.rel (%p132) target = $region16
      $region15: #{_position_conv2d_impl.1} parent=11 // pred_region
        _
      $region16: #{_position_conv2d_impl.1} parent=11 // pred_fallthru
        _
      // Predicated region
      $region17: #{_position_conv2d_impl.1} parent=11 // pred_check
        %p135 = pneg %p89
      $region18: #{_position_conv2d_impl.1} parent=11 // pred_check_branch
        %137 = sbr.rel (%p135) target = $region20
      $region19: #{_position_conv2d_impl.1} parent=11 // pred_region
        _
      $region20: #{_position_conv2d_impl.1} parent=11 // pred_fallthru
        _
    $region12: #{_position_conv2d_impl.1} parent=5 // pred_fallthru
      _
    %p138 = scmp.lt.s32.totalorder %s9, 2
    // Predicated region
    $region21: #{_position_conv2d_impl.1} parent=5 // pred_check
      %p139 = pneg %p138
    $region22: #{_position_conv2d_impl.1} parent=5 // pred_check_branch
      %141 = sbr.rel (%p139) target = $region24
    $region23: #{_position_conv2d_impl.1} parent=5 // pred_region
      // Predicated region
      $region25: #{_position_conv2d_impl.1} parent=23 // pred_check
        %p142 = pneg %p41
      $region26: #{_position_conv2d_impl.1} parent=23 // pred_check_branch
        %144 = sbr.rel (%p142) target = $region28
      $region27: #{_position_conv2d_impl.1} parent=23 // pred_region
        %p145 = scmp.lt.s32.totalorder %s16, 1
        %s146 = scalar_select %p145, %s16, 1
        %s147 = smul.addr %s146, 36
        %s148 = smul.addr %s147, 8
        %s149 = scalar_lea.vmem %s0, %s148
      $region28: #{_position_conv2d_impl.1} parent=23 // pred_fallthru
        _
    $region24: #{_position_conv2d_impl.1} parent=5 // pred_fallthru
      _
    %p150 = scmp.le.s32.totalorder 1, %s9
    %p151 = scmp.lt.s32.totalorder %s9, 3
    %p152 = pnand %p150, %p151
    %p153 = pneg %p152
    // Predicated region
    $region29: #{_position_conv2d_impl.1} parent=5 // pred_check
      _
    $region30: #{_position_conv2d_impl.1} parent=5 // pred_check_branch
      %155 = sbr.rel (%p152) target = $region32
    $region31: #{_position_conv2d_impl.1} parent=5 // pred_region
      %s156 = ssub.s32 %s9, 1
      %p157 = scmp.lt.s32.totalorder %s18, 1
      %s158 = scalar_select %p157, %s18, 1
      %s159 = smul.addr %s158, 36
      %s160 = smul.addr %s159, 8
      %s161 = scalar_lea.vmem %s0, %s160
      %p162 = pneg %p47
      %p163 = pneg %p44
      %p164 = pneg %p68
      %p165 = pneg %p65
      %p166 = pneg %p89
      %p167 = pneg %p86
      %p168 = pneg %p117
      %p169 = pneg %p114
      %s170 = smul.u32 32, %s19
      %p171 = scmp.lt.s32.totalorder %s18, 1
      %s172 = scalar_select %p171, %s18, 1
      %p173 = scmp.lt.s32.totalorder %s170, 31
      %s174 = scalar_select %p173, %s170, 31
      %s175 = smul.addr %s172, 32
      %s176 = sadd.s32 %s174, %s175
      %s177 = smul.addr %s176, 8
      %s178 = scalar_lea.vmem %s3, %s177
      %p179 = scmp.lt.s32.totalorder %s18, 1
      %s180 = scalar_select %p179, %s18, 1
      %s181 = smul.addr %s180, 36
      %s182 = smul.addr %s181, 8
      %s183 = scalar_lea.vmem %s0, %s182
      %s184 = smul.u32 32, %s19
      %p185 = scmp.lt.s32.totalorder %s18, 1
      %s186 = scalar_select %p185, %s18, 1
      %p187 = scmp.lt.s32.totalorder %s184, 31
      %s188 = scalar_select %p187, %s184, 31
      %s189 = smul.addr %s186, 32
      %s190 = sadd.s32 %s188, %s189
      %s191 = smul.addr %s190, 8
      %s192 = scalar_lea.vmem %s3, %s191
      %s193 = smul.u32 32, %s19
      %s194 = smul.u32 %s19, 16
      %s195 = smul.u32 %s19, 256
      %s196 = scalar_lea.vmem %s183, %s195
      %v197 = vld [vmem:[%s196] sm:$0xff]
      %v198 = vld [vmem:[%s196 + $0x8] sm:$0xff]
      %v199 = vld [vmem:[%s196 + $0x10] sm:$0xff]
      %v200 = vld [vmem:[%s196 + $0x18] sm:$0xff]
      %v201 = vld [vmem:[%s196 + $0x20] sm:$0xff]
      %v202 = vld [vmem:[%s196 + $0x28] sm:$0xff]
      %v203 = vld [vmem:[%s196 + $0x30] sm:$0xff]
      %v204 = vld [vmem:[%s196 + $0x38] sm:$0xff]
      %v205 = vld [vmem:[%s196 + $0x40] sm:$0xff]
      %v206 = vld [vmem:[%s196 + $0x48] sm:$0xff]
      %v207 = vld [vmem:[%s196 + $0x50] sm:$0xff]
      %v208 = vld [vmem:[%s196 + $0x58] sm:$0xff]
      %v209 = vld [vmem:[%s196 + $0x60] sm:$0xff]
      %v210 = vld [vmem:[%s196 + $0x68] sm:$0xff]
      %v211 = vld [vmem:[%s196 + $0x70] sm:$0xff]
      %v212 = vld [vmem:[%s196 + $0x78] sm:$0xff]
      %v213 = vld [vmem:[%s196 + $0x80] sm:$0xff]
      %v214 = vld [vmem:[%s196 + $0x88] sm:$0xff]
      %v215 = vld [vmem:[%s196 + $0x90] sm:$0xff]
      %v216 = vld [vmem:[%s196 + $0x98] sm:$0xff]
      %v217 = vld [vmem:[%s196 + $0xa0] sm:$0xff]
      %v218 = vld [vmem:[%s196 + $0xa8] sm:$0xff]
      %v219 = vld [vmem:[%s196 + $0xb0] sm:$0xff]
      %v220 = vld [vmem:[%s196 + $0xb8] sm:$0xff]
      %v221 = vld [vmem:[%s196 + $0xc0] sm:$0xff]
      %v222 = vld [vmem:[%s196 + $0xc8] sm:$0xff]
      %v223 = vld [vmem:[%s196 + $0xd0] sm:$0xff]
      %v224 = vld [vmem:[%s196 + $0xd8] sm:$0xff]
      %v225 = vld [vmem:[%s196 + $0xe0] sm:$0xff]
      %v226 = vld [vmem:[%s196 + $0xe8] sm:$0xff]
      %v227 = vld [vmem:[%s196 + $0xf0] sm:$0xff]
      %v228 = vld [vmem:[%s196 + $0xf8] sm:$0xff]
      %v229 = vld [vmem:[%s1] sm:$0xff]
      %v230 = vld [vmem:[%s1 + $0x8] sm:$0xf]
      %s231 = sadd.s32 %s194, 1
      %s232 = smul.u32 %s231, 16
      %s233 = scalar_lea.vmem %s183, %s232
      %v234 = vld [vmem:[%s233] sm:$0xff]
      %v235 = vld [vmem:[%s233 + $0x8] sm:$0xff]
      %v236 = vld [vmem:[%s233 + $0x10] sm:$0xff]
      %v237 = vld [vmem:[%s233 + $0x18] sm:$0xff]
      %v238 = vld [vmem:[%s233 + $0x20] sm:$0xff]
      %v239 = vld [vmem:[%s233 + $0x28] sm:$0xff]
      %v240 = vld [vmem:[%s233 + $0x30] sm:$0xff]
      %v241 = vld [vmem:[%s233 + $0x38] sm:$0xff]
      %v242 = vld [vmem:[%s233 + $0x40] sm:$0xff]
      %v243 = vld [vmem:[%s233 + $0x48] sm:$0xff]
      %v244 = vld [vmem:[%s233 + $0x50] sm:$0xff]
      %v245 = vld [vmem:[%s233 + $0x58] sm:$0xff]
      %v246 = vld [vmem:[%s233 + $0x60] sm:$0xff]
      %v247 = vld [vmem:[%s233 + $0x68] sm:$0xff]
      %v248 = vld [vmem:[%s233 + $0x70] sm:$0xff]
      %v249 = vld [vmem:[%s233 + $0x78] sm:$0xff]
      %v250 = vld [vmem:[%s233 + $0x80] sm:$0xff]
      %v251 = vld [vmem:[%s233 + $0x88] sm:$0xff]
      %v252 = vld [vmem:[%s233 + $0x90] sm:$0xff]
      %v253 = vld [vmem:[%s233 + $0x98] sm:$0xff]
      %v254 = vld [vmem:[%s233 + $0xa0] sm:$0xff]
      %v255 = vld [vmem:[%s233 + $0xa8] sm:$0xff]
      %v256 = vld [vmem:[%s233 + $0xb0] sm:$0xff]
      %v257 = vld [vmem:[%s233 + $0xb8] sm:$0xff]
      %v258 = vld [vmem:[%s233 + $0xc0] sm:$0xff]
      %v259 = vld [vmem:[%s233 + $0xc8] sm:$0xff]
      %v260 = vld [vmem:[%s233 + $0xd0] sm:$0xff]
      %v261 = vld [vmem:[%s233 + $0xd8] sm:$0xff]
      %v262 = vld [vmem:[%s233 + $0xe0] sm:$0xff]
      %v263 = vld [vmem:[%s233 + $0xe8] sm:$0xff]
      %v264 = vld [vmem:[%s233 + $0xf0] sm:$0xff]
      %v265 = vld [vmem:[%s233 + $0xf8] sm:$0xff]
      %s266 = scalar_lea.vmem %s1, 16
      %v267 = vld [vmem:[%s266] sm:$0xff]
      %v268 = vld [vmem:[%s266 + $0x8] sm:$0xf]
      %vm269 = vcmask 97280
      %v271 = vsel %vm269, %v234, 0
      %v274 = vsel %vm269, %v235, 0
      %v277 = vsel %vm269, %v236, 0
      %v280 = vsel %vm269, %v237, 0
      %v283 = vsel %vm269, %v238, 0
      %v286 = vsel %vm269, %v239, 0
      %v289 = vsel %vm269, %v240, 0
      %v292 = vsel %vm269, %v241, 0
      %v295 = vsel %vm269, %v242, 0
      %v298 = vsel %vm269, %v243, 0
      %v301 = vsel %vm269, %v244, 0
      %v304 = vsel %vm269, %v245, 0
      %v307 = vsel %vm269, %v246, 0
      %v310 = vsel %vm269, %v247, 0
      %v313 = vsel %vm269, %v248, 0
      %v316 = vsel %vm269, %v249, 0
      %v319 = vsel %vm269, %v250, 0
      %v322 = vsel %vm269, %v251, 0
      %v325 = vsel %vm269, %v252, 0
      %v328 = vsel %vm269, %v253, 0
      %v331 = vsel %vm269, %v254, 0
      %v334 = vsel %vm269, %v255, 0
      %v337 = vsel %vm269, %v256, 0
      %v340 = vsel %vm269, %v257, 0
      %v343 = vsel %vm269, %v258, 0
      %v346 = vsel %vm269, %v259, 0
      %v349 = vsel %vm269, %v260, 0
      %v352 = vsel %vm269, %v261, 0
      %v355 = vsel %vm269, %v262, 0
      %v358 = vsel %vm269, %v263, 0
      %v361 = vsel %vm269, %v264, 0
      %v364 = vsel %vm269, %v265, 0
      %vm366 = vcmask 1043456
      %v368 = vsel %vm366, %v268, 0
      %370 = vmatprep.subr.mxu0 0.0
      %371 = vmatpush1.msra.mxu0 0.0
      %372 = vmatprep.subr.mxu0 0.0
      %373 = vmatpush1.msra.mxu0 0.0
      %374 = vmatprep.subr.mxu0 0.0
      %375 = vmatpush1.msra.mxu0 0.0
      %376 = vmatprep.subr.mxu0 0.0
      %377 = vmatpush1.msra.mxu0 0.0
      %378 = vmatprep.subr.mxu0 0.0
      %379 = vmatpush1.msra.mxu0 0.0
      %380 = vmatprep.subr.mxu0 0.0
      %381 = vmatpush1.msra.mxu0 0.0
      %382 = vmatprep.subr.mxu0 0.0
      %383 = vmatpush1.msra.mxu0 0.0
      %384 = vmatprep.subr.mxu0 0.0
      %385 = vmatpush1.msra.mxu0 0.0
      %386 = vmatprep.subr.mxu0 0.0
      %387 = vmatpush1.msra.mxu0 0.0
      %388 = vmatprep.subr.mxu0 0.0
      %389 = vmatpush1.msra.mxu0 0.0
      %390 = vmatprep.subr.mxu0 0.0
      %391 = vmatpush1.msra.mxu0 0.0
      %392 = vmatprep.subr.mxu0 0.0
      %393 = vmatpush1.msra.mxu0 0.0
      %394 = vmatprep.subr.mxu0 0.0
      %395 = vmatpush1.msra.mxu0 0.0
      %396 = vmatprep.subr.mxu0 0.0
      %397 = vmatpush1.msra.mxu0 0.0
      %398 = vmatprep.subr.mxu0 0.0
      %399 = vmatpush1.msra.mxu0 %v368
      %400 = vmatprep.subr.mxu0 0.0
      %401 = vmatpush1.msra.mxu0 %v267
      %402 = vmatprep.subr.mxu0 0.0
      %403 = vmatpush2.msra.mxu0 0.0
      %404 = vmatprep.subr.mxu0 0.0
      %405 = vmatpush2.msra.mxu0 0.0
      %406 = vmatprep.subr.mxu0 0.0
      %407 = vmatpush2.msra.mxu0 0.0
      %408 = vmatprep.subr.mxu0 0.0
      %409 = vmatpush2.msra.mxu0 0.0
      %410 = vmatprep.subr.mxu0 0.0
      %411 = vmatpush2.msra.mxu0 0.0
      %412 = vmatprep.subr.mxu0 0.0
      %413 = vmatpush2.msra.mxu0 0.0
      %414 = vmatprep.subr.mxu0 0.0
      %415 = vmatpush2.msra.mxu0 0.0
      %416 = vmatprep.subr.mxu0 0.0
      %417 = vmatpush2.msra.mxu0 0.0
      %418 = vmatprep.subr.mxu0 0.0
      %419 = vmatpush2.msra.mxu0 0.0
      %420 = vmatprep.subr.mxu0 0.0
      %421 = vmatpush2.msra.mxu0 0.0
      %422 = vmatprep.subr.mxu0 0.0
      %423 = vmatpush2.msra.mxu0 0.0
      %424 = vmatprep.subr.mxu0 0.0
      %425 = vmatpush2.msra.mxu0 0.0
      %426 = vmatprep.subr.mxu0 0.0
      %427 = vmatpush2.msra.mxu0 0.0
      %428 = vmatprep.subr.mxu0 0.0
      %429 = vmatpush2.msra.mxu0 0.0
      %430 = vmatprep.subr.mxu0 0.0
      %431 = vmatpush2.msra.mxu0 0.0
      %432 = vmatprep.subr.mxu0 0.0
      %433 = vmatpush2.msra.mxu0 0.0
      %434 = vmatprep.mubr.f32.mxu0 0.0
      %435 = vmatmul.mubr.f32.gmra.mxu0 %v271
      %v436 = vpop.f32.mrf.mxu0
      %v437 = vadd.f32 0.0, %v436
      %v438 = vpop.f32.mrf.mxu0
      %439 = vmatprep.mubr.f32.mxu0 0.0
      %440 = vmatmul.mubr.f32.gmra.mxu0 %v274
      %v441 = vpop.f32.mrf.mxu0
      %v442 = vadd.f32 0.0, %v441
      %v443 = vpop.f32.mrf.mxu0
      %444 = vmatprep.mubr.f32.mxu0 0.0
      %445 = vmatmul.mubr.f32.gmra.mxu0 %v277
      %v446 = vpop.f32.mrf.mxu0
      %v447 = vadd.f32 0.0, %v446
      %v448 = vpop.f32.mrf.mxu0
      %449 = vmatprep.mubr.f32.mxu0 0.0
      %450 = vmatmul.mubr.f32.gmra.mxu0 %v280
      %v451 = vpop.f32.mrf.mxu0
      %v452 = vadd.f32 0.0, %v451
      %v453 = vpop.f32.mrf.mxu0
      %454 = vmatprep.mubr.f32.mxu0 0.0
      %455 = vmatmul.mubr.f32.gmra.mxu0 %v283
      %v456 = vpop.f32.mrf.mxu0
      %v457 = vadd.f32 0.0, %v456
      %v458 = vpop.f32.mrf.mxu0
      %459 = vmatprep.mubr.f32.mxu0 0.0
      %460 = vmatmul.mubr.f32.gmra.mxu0 %v286
      %v461 = vpop.f32.mrf.mxu0
      %v462 = vadd.f32 0.0, %v461
      %v463 = vpop.f32.mrf.mxu0
      %464 = vmatprep.mubr.f32.mxu0 0.0
      %465 = vmatmul.mubr.f32.gmra.mxu0 %v289
      %v466 = vpop.f32.mrf.mxu0
      %v467 = vadd.f32 0.0, %v466
      %v468 = vpop.f32.mrf.mxu0
      %469 = vmatprep.mubr.f32.mxu0 0.0
      %470 = vmatmul.mubr.f32.gmra.mxu0 %v292
      %v471 = vpop.f32.mrf.mxu0
      %v472 = vadd.f32 0.0, %v471
      %v473 = vpop.f32.mrf.mxu0
      %474 = vmatprep.mubr.f32.mxu0 0.0
      %475 = vmatmul.mubr.f32.gmra.mxu0 %v295
      %v476 = vpop.f32.mrf.mxu0
      %v477 = vadd.f32 0.0, %v476
      %v478 = vpop.f32.mrf.mxu0
      %479 = vmatprep.mubr.f32.mxu0 0.0
      %480 = vmatmul.mubr.f32.gmra.mxu0 %v298
      %v481 = vpop.f32.mrf.mxu0
      %v482 = vadd.f32 0.0, %v481
      %v483 = vpop.f32.mrf.mxu0
      %484 = vmatprep.mubr.f32.mxu0 0.0
      %485 = vmatmul.mubr.f32.gmra.mxu0 %v301
      %v486 = vpop.f32.mrf.mxu0
      %v487 = vadd.f32 0.0, %v486
      %v488 = vpop.f32.mrf.mxu0
      %489 = vmatprep.mubr.f32.mxu0 0.0
      %490 = vmatmul.mubr.f32.gmra.mxu0 %v304
      %v491 = vpop.f32.mrf.mxu0
      %v492 = vadd.f32 0.0, %v491
      %v493 = vpop.f32.mrf.mxu0
      %494 = vmatprep.mubr.f32.mxu0 0.0
      %495 = vmatmul.mubr.f32.gmra.mxu0 %v307
      %v496 = vpop.f32.mrf.mxu0
      %v497 = vadd.f32 0.0, %v496
      %v498 = vpop.f32.mrf.mxu0
      %499 = vmatprep.mubr.f32.mxu0 0.0
      %500 = vmatmul.mubr.f32.gmra.mxu0 %v310
      %v501 = vpop.f32.mrf.mxu0
      %v502 = vadd.f32 0.0, %v501
      %v503 = vpop.f32.mrf.mxu0
      %504 = vmatprep.mubr.f32.mxu0 0.0
      %505 = vmatmul.mubr.f32.gmra.mxu0 %v313
      %v506 = vpop.f32.mrf.mxu0
      %v507 = vadd.f32 0.0, %v506
      %v508 = vpop.f32.mrf.mxu0
      %509 = vmatprep.mubr.f32.mxu0 0.0
      %510 = vmatmul.mubr.f32.gmra.mxu0 %v316
      %v511 = vpop.f32.mrf.mxu0
      %v512 = vadd.f32 0.0, %v511
      %v513 = vpop.f32.mrf.mxu0
      %514 = vmatprep.mubr.f32.mxu0 0.0
      %515 = vmatmul.mubr.f32.gmra.mxu0 %v319
      %v516 = vpop.f32.mrf.mxu0
      %v517 = vadd.f32 0.0, %v516
      %v518 = vpop.f32.mrf.mxu0
      %519 = vmatprep.mubr.f32.mxu0 0.0
      %520 = vmatmul.mubr.f32.gmra.mxu0 %v322
      %v521 = vpop.f32.mrf.mxu0
      %v522 = vadd.f32 0.0, %v521
      %v523 = vpop.f32.mrf.mxu0
      %524 = vmatprep.mubr.f32.mxu0 0.0
      %525 = vmatmul.mubr.f32.gmra.mxu0 %v325
      %v526 = vpop.f32.mrf.mxu0
      %v527 = vadd.f32 0.0, %v526
      %v528 = vpop.f32.mrf.mxu0
      %529 = vmatprep.mubr.f32.mxu0 0.0
      %530 = vmatmul.mubr.f32.gmra.mxu0 %v328
      %v531 = vpop.f32.mrf.mxu0
      %v532 = vadd.f32 0.0, %v531
      %v533 = vpop.f32.mrf.mxu0
      %534 = vmatprep.mubr.f32.mxu0 0.0
      %535 = vmatmul.mubr.f32.gmra.mxu0 %v331
      %v536 = vpop.f32.mrf.mxu0
      %v537 = vadd.f32 0.0, %v536
      %v538 = vpop.f32.mrf.mxu0
      %539 = vmatprep.mubr.f32.mxu0 0.0
      %540 = vmatmul.mubr.f32.gmra.mxu0 %v334
      %v541 = vpop.f32.mrf.mxu0
      %v542 = vadd.f32 0.0, %v541
      %v543 = vpop.f32.mrf.mxu0
      %544 = vmatprep.mubr.f32.mxu0 0.0
      %545 = vmatmul.mubr.f32.gmra.mxu0 %v337
      %v546 = vpop.f32.mrf.mxu0
      %v547 = vadd.f32 0.0, %v546
      %v548 = vpop.f32.mrf.mxu0
      %549 = vmatprep.mubr.f32.mxu0 0.0
      %550 = vmatmul.mubr.f32.gmra.mxu0 %v340
      %v551 = vpop.f32.mrf.mxu0
      %v552 = vadd.f32 0.0, %v551
      %v553 = vpop.f32.mrf.mxu0
      %554 = vmatprep.mubr.f32.mxu0 0.0
      %555 = vmatmul.mubr.f32.gmra.mxu0 %v343
      %v556 = vpop.f32.mrf.mxu0
      %v557 = vadd.f32 0.0, %v556
      %v558 = vpop.f32.mrf.mxu0
      %559 = vmatprep.mubr.f32.mxu0 0.0
      %560 = vmatmul.mubr.f32.gmra.mxu0 %v346
      %v561 = vpop.f32.mrf.mxu0
      %v562 = vadd.f32 0.0, %v561
      %v563 = vpop.f32.mrf.mxu0
      %564 = vmatprep.mubr.f32.mxu0 0.0
      %565 = vmatmul.mubr.f32.gmra.mxu0 %v349
      %v566 = vpop.f32.mrf.mxu0
      %v567 = vadd.f32 0.0, %v566
      %v568 = vpop.f32.mrf.mxu0
      %569 = vmatprep.mubr.f32.mxu0 0.0
      %570 = vmatmul.mubr.f32.gmra.mxu0 %v352
      %v571 = vpop.f32.mrf.mxu0
      %v572 = vadd.f32 0.0, %v571
      %v573 = vpop.f32.mrf.mxu0
      %574 = vmatprep.mubr.f32.mxu0 0.0
      %575 = vmatmul.mubr.f32.gmra.mxu0 %v355
      %v576 = vpop.f32.mrf.mxu0
      %v577 = vadd.f32 0.0, %v576
      %v578 = vpop.f32.mrf.mxu0
      %579 = vmatprep.mubr.f32.mxu0 0.0
      %580 = vmatmul.mubr.f32.gmra.mxu0 %v358
      %v581 = vpop.f32.mrf.mxu0
      %v582 = vadd.f32 0.0, %v581
      %v583 = vpop.f32.mrf.mxu0
      %584 = vmatprep.mubr.f32.mxu0 0.0
      %585 = vmatmul.mubr.f32.gmra.mxu0 %v361
      %v586 = vpop.f32.mrf.mxu0
      %v587 = vadd.f32 0.0, %v586
      %v588 = vpop.f32.mrf.mxu0
      %589 = vmatprep.mubr.f32.mxu0 0.0
      %590 = vmatmul.mubr.f32.gmra.mxu0 %v364
      %v591 = vpop.f32.mrf.mxu0
      %v592 = vadd.f32 0.0, %v591
      %v593 = vpop.f32.mrf.mxu0
      %594 = vdwg.mxu0
      %v596 = vsel %vm269, %v197, 0
      %v599 = vsel %vm269, %v198, 0
      %v602 = vsel %vm269, %v199, 0
      %v605 = vsel %vm269, %v200, 0
      %v608 = vsel %vm269, %v201, 0
      %v611 = vsel %vm269, %v202, 0
      %v614 = vsel %vm269, %v203, 0
      %v617 = vsel %vm269, %v204, 0
      %v620 = vsel %vm269, %v205, 0
      %v623 = vsel %vm269, %v206, 0
      %v626 = vsel %vm269, %v207, 0
      %v629 = vsel %vm269, %v208, 0
      %v632 = vsel %vm269, %v209, 0
      %v635 = vsel %vm269, %v210, 0
      %v638 = vsel %vm269, %v211, 0
      %v641 = vsel %vm269, %v212, 0
      %v644 = vsel %vm269, %v213, 0
      %v647 = vsel %vm269, %v214, 0
      %v650 = vsel %vm269, %v215, 0
      %v653 = vsel %vm269, %v216, 0
      %v656 = vsel %vm269, %v217, 0
      %v659 = vsel %vm269, %v218, 0
      %v662 = vsel %vm269, %v219, 0
      %v665 = vsel %vm269, %v220, 0
      %v668 = vsel %vm269, %v221, 0
      %v671 = vsel %vm269, %v222, 0
      %v674 = vsel %vm269, %v223, 0
      %v677 = vsel %vm269, %v224, 0
      %v680 = vsel %vm269, %v225, 0
      %v683 = vsel %vm269, %v226, 0
      %v686 = vsel %vm269, %v227, 0
      %v689 = vsel %vm269, %v228, 0
      %v692 = vsel %vm366, %v230, 0
      %694 = vmatprep.subr.mxu0 0.0
      %695 = vmatpush1.msra.mxu0 0.0
      %696 = vmatprep.subr.mxu0 0.0
      %697 = vmatpush1.msra.mxu0 0.0
      %698 = vmatprep.subr.mxu0 0.0
      %699 = vmatpush1.msra.mxu0 0.0
      %700 = vmatprep.subr.mxu0 0.0
      %701 = vmatpush1.msra.mxu0 0.0
      %702 = vmatprep.subr.mxu0 0.0
      %703 = vmatpush1.msra.mxu0 0.0
      %704 = vmatprep.subr.mxu0 0.0
      %705 = vmatpush1.msra.mxu0 0.0
      %706 = vmatprep.subr.mxu0 0.0
      %707 = vmatpush1.msra.mxu0 0.0
      %708 = vmatprep.subr.mxu0 0.0
      %709 = vmatpush1.msra.mxu0 0.0
      %710 = vmatprep.subr.mxu0 0.0
      %711 = vmatpush1.msra.mxu0 0.0
      %712 = vmatprep.subr.mxu0 0.0
      %713 = vmatpush1.msra.mxu0 0.0
      %714 = vmatprep.subr.mxu0 0.0
      %715 = vmatpush1.msra.mxu0 0.0
      %716 = vmatprep.subr.mxu0 0.0
      %717 = vmatpush1.msra.mxu0 0.0
      %718 = vmatprep.subr.mxu0 0.0
      %719 = vmatpush1.msra.mxu0 0.0
      %720 = vmatprep.subr.mxu0 0.0
      %721 = vmatpush1.msra.mxu0 0.0
      %722 = vmatprep.subr.mxu0 0.0
      %723 = vmatpush1.msra.mxu0 %v692
      %724 = vmatprep.subr.mxu0 0.0
      %725 = vmatpush1.msra.mxu0 %v229
      %726 = vmatprep.subr.mxu0 0.0
      %727 = vmatpush2.msra.mxu0 0.0
      %728 = vmatprep.subr.mxu0 0.0
      %729 = vmatpush2.msra.mxu0 0.0
      %730 = vmatprep.subr.mxu0 0.0
      %731 = vmatpush2.msra.mxu0 0.0
      %732 = vmatprep.subr.mxu0 0.0
      %733 = vmatpush2.msra.mxu0 0.0
      %734 = vmatprep.subr.mxu0 0.0
      %735 = vmatpush2.msra.mxu0 0.0
      %736 = vmatprep.subr.mxu0 0.0
      %737 = vmatpush2.msra.mxu0 0.0
      %738 = vmatprep.subr.mxu0 0.0
      %739 = vmatpush2.msra.mxu0 0.0
      %740 = vmatprep.subr.mxu0 0.0
      %741 = vmatpush2.msra.mxu0 0.0
      %742 = vmatprep.subr.mxu0 0.0
      %743 = vmatpush2.msra.mxu0 0.0
      %744 = vmatprep.subr.mxu0 0.0
      %745 = vmatpush2.msra.mxu0 0.0
      %746 = vmatprep.subr.mxu0 0.0
      %747 = vmatpush2.msra.mxu0 0.0
      %748 = vmatprep.subr.mxu0 0.0
      %749 = vmatpush2.msra.mxu0 0.0
      %750 = vmatprep.subr.mxu0 0.0
      %751 = vmatpush2.msra.mxu0 0.0
      %752 = vmatprep.subr.mxu0 0.0
      %753 = vmatpush2.msra.mxu0 0.0
      %754 = vmatprep.subr.mxu0 0.0
      %755 = vmatpush2.msra.mxu0 0.0
      %756 = vmatprep.subr.mxu0 0.0
      %757 = vmatpush2.msra.mxu0 0.0
      %758 = vmatprep.mubr.f32.mxu0 0.0
      %759 = vmatmul.mubr.f32.gmra.mxu0 %v596
      %v760 = vpop.f32.mrf.mxu0
      %v761 = vadd.f32 %v437, %v760
      %v762 = vpop.f32.mrf.mxu0
      %763 = vmatprep.mubr.f32.mxu0 0.0
      %764 = vmatmul.mubr.f32.gmra.mxu0 %v599
      %v765 = vpop.f32.mrf.mxu0
      %v766 = vadd.f32 %v442, %v765
      %v767 = vpop.f32.mrf.mxu0
      %768 = vmatprep.mubr.f32.mxu0 0.0
      %769 = vmatmul.mubr.f32.gmra.mxu0 %v602
      %v770 = vpop.f32.mrf.mxu0
      %v771 = vadd.f32 %v447, %v770
      %v772 = vpop.f32.mrf.mxu0
      %773 = vmatprep.mubr.f32.mxu0 0.0
      %774 = vmatmul.mubr.f32.gmra.mxu0 %v605
      %v775 = vpop.f32.mrf.mxu0
      %v776 = vadd.f32 %v452, %v775
      %v777 = vpop.f32.mrf.mxu0
      %778 = vmatprep.mubr.f32.mxu0 0.0
      %779 = vmatmul.mubr.f32.gmra.mxu0 %v608
      %v780 = vpop.f32.mrf.mxu0
      %v781 = vadd.f32 %v457, %v780
      %v782 = vpop.f32.mrf.mxu0
      %783 = vmatprep.mubr.f32.mxu0 0.0
      %784 = vmatmul.mubr.f32.gmra.mxu0 %v611
      %v785 = vpop.f32.mrf.mxu0
      %v786 = vadd.f32 %v462, %v785
      %v787 = vpop.f32.mrf.mxu0
      %788 = vmatprep.mubr.f32.mxu0 0.0
      %789 = vmatmul.mubr.f32.gmra.mxu0 %v614
      %v790 = vpop.f32.mrf.mxu0
      %v791 = vadd.f32 %v467, %v790
      %v792 = vpop.f32.mrf.mxu0
      %793 = vmatprep.mubr.f32.mxu0 0.0
      %794 = vmatmul.mubr.f32.gmra.mxu0 %v617
      %v795 = vpop.f32.mrf.mxu0
      %v796 = vadd.f32 %v472, %v795
      %v797 = vpop.f32.mrf.mxu0
      %798 = vmatprep.mubr.f32.mxu0 0.0
      %799 = vmatmul.mubr.f32.gmra.mxu0 %v620
      %v800 = vpop.f32.mrf.mxu0
      %v801 = vadd.f32 %v477, %v800
      %v802 = vpop.f32.mrf.mxu0
      %803 = vmatprep.mubr.f32.mxu0 0.0
      %804 = vmatmul.mubr.f32.gmra.mxu0 %v623
      %v805 = vpop.f32.mrf.mxu0
      %v806 = vadd.f32 %v482, %v805
      %v807 = vpop.f32.mrf.mxu0
      %808 = vmatprep.mubr.f32.mxu0 0.0
      %809 = vmatmul.mubr.f32.gmra.mxu0 %v626
      %v810 = vpop.f32.mrf.mxu0
      %v811 = vadd.f32 %v487, %v810
      %v812 = vpop.f32.mrf.mxu0
      %813 = vmatprep.mubr.f32.mxu0 0.0
      %814 = vmatmul.mubr.f32.gmra.mxu0 %v629
      %v815 = vpop.f32.mrf.mxu0
      %v816 = vadd.f32 %v492, %v815
      %v817 = vpop.f32.mrf.mxu0
      %818 = vmatprep.mubr.f32.mxu0 0.0
      %819 = vmatmul.mubr.f32.gmra.mxu0 %v632
      %v820 = vpop.f32.mrf.mxu0
      %v821 = vadd.f32 %v497, %v820
      %v822 = vpop.f32.mrf.mxu0
      %823 = vmatprep.mubr.f32.mxu0 0.0
      %824 = vmatmul.mubr.f32.gmra.mxu0 %v635
      %v825 = vpop.f32.mrf.mxu0
      %v826 = vadd.f32 %v502, %v825
      %v827 = vpop.f32.mrf.mxu0
      %828 = vmatprep.mubr.f32.mxu0 0.0
      %829 = vmatmul.mubr.f32.gmra.mxu0 %v638
      %v830 = vpop.f32.mrf.mxu0
      %v831 = vadd.f32 %v507, %v830
      %v832 = vpop.f32.mrf.mxu0
      %833 = vmatprep.mubr.f32.mxu0 0.0
      %834 = vmatmul.mubr.f32.gmra.mxu0 %v641
      %v835 = vpop.f32.mrf.mxu0
      %v836 = vadd.f32 %v512, %v835
      %v837 = vpop.f32.mrf.mxu0
      %838 = vmatprep.mubr.f32.mxu0 0.0
      %839 = vmatmul.mubr.f32.gmra.mxu0 %v644
      %v840 = vpop.f32.mrf.mxu0
      %v841 = vadd.f32 %v517, %v840
      %v842 = vpop.f32.mrf.mxu0
      %843 = vmatprep.mubr.f32.mxu0 0.0
      %844 = vmatmul.mubr.f32.gmra.mxu0 %v647
      %v845 = vpop.f32.mrf.mxu0
      %v846 = vadd.f32 %v522, %v845
      %v847 = vpop.f32.mrf.mxu0
      %848 = vmatprep.mubr.f32.mxu0 0.0
      %849 = vmatmul.mubr.f32.gmra.mxu0 %v650
      %v850 = vpop.f32.mrf.mxu0
      %v851 = vadd.f32 %v527, %v850
      %v852 = vpop.f32.mrf.mxu0
      %853 = vmatprep.mubr.f32.mxu0 0.0
      %854 = vmatmul.mubr.f32.gmra.mxu0 %v653
      %v855 = vpop.f32.mrf.mxu0
      %v856 = vadd.f32 %v532, %v855
      %v857 = vpop.f32.mrf.mxu0
      %858 = vmatprep.mubr.f32.mxu0 0.0
      %859 = vmatmul.mubr.f32.gmra.mxu0 %v656
      %v860 = vpop.f32.mrf.mxu0
      %v861 = vadd.f32 %v537, %v860
      %v862 = vpop.f32.mrf.mxu0
      %863 = vmatprep.mubr.f32.mxu0 0.0
      %864 = vmatmul.mubr.f32.gmra.mxu0 %v659
      %v865 = vpop.f32.mrf.mxu0
      %v866 = vadd.f32 %v542, %v865
      %v867 = vpop.f32.mrf.mxu0
      %868 = vmatprep.mubr.f32.mxu0 0.0
      %869 = vmatmul.mubr.f32.gmra.mxu0 %v662
      %v870 = vpop.f32.mrf.mxu0
      %v871 = vadd.f32 %v547, %v870
      %v872 = vpop.f32.mrf.mxu0
      %873 = vmatprep.mubr.f32.mxu0 0.0
      %874 = vmatmul.mubr.f32.gmra.mxu0 %v665
      %v875 = vpop.f32.mrf.mxu0
      %v876 = vadd.f32 %v552, %v875
      %v877 = vpop.f32.mrf.mxu0
      %878 = vmatprep.mubr.f32.mxu0 0.0
      %879 = vmatmul.mubr.f32.gmra.mxu0 %v668
      %v880 = vpop.f32.mrf.mxu0
      %v881 = vadd.f32 %v557, %v880
      %v882 = vpop.f32.mrf.mxu0
      %883 = vmatprep.mubr.f32.mxu0 0.0
      %884 = vmatmul.mubr.f32.gmra.mxu0 %v671
      %v885 = vpop.f32.mrf.mxu0
      %v886 = vadd.f32 %v562, %v885
      %v887 = vpop.f32.mrf.mxu0
      %888 = vmatprep.mubr.f32.mxu0 0.0
      %889 = vmatmul.mubr.f32.gmra.mxu0 %v674
      %v890 = vpop.f32.mrf.mxu0
      %v891 = vadd.f32 %v567, %v890
      %v892 = vpop.f32.mrf.mxu0
      %893 = vmatprep.mubr.f32.mxu0 0.0
      %894 = vmatmul.mubr.f32.gmra.mxu0 %v677
      %v895 = vpop.f32.mrf.mxu0
      %v896 = vadd.f32 %v572, %v895
      %v897 = vpop.f32.mrf.mxu0
      %898 = vmatprep.mubr.f32.mxu0 0.0
      %899 = vmatmul.mubr.f32.gmra.mxu0 %v680
      %v900 = vpop.f32.mrf.mxu0
      %v901 = vadd.f32 %v577, %v900
      %v902 = vpop.f32.mrf.mxu0
      %903 = vmatprep.mubr.f32.mxu0 0.0
      %904 = vmatmul.mubr.f32.gmra.mxu0 %v683
      %v905 = vpop.f32.mrf.mxu0
      %v906 = vadd.f32 %v582, %v905
      %v907 = vpop.f32.mrf.mxu0
      %908 = vmatprep.mubr.f32.mxu0 0.0
      %909 = vmatmul.mubr.f32.gmra.mxu0 %v686
      %v910 = vpop.f32.mrf.mxu0
      %v911 = vadd.f32 %v587, %v910
      %v912 = vpop.f32.mrf.mxu0
      %913 = vmatprep.mubr.f32.mxu0 0.0
      %914 = vmatmul.mubr.f32.gmra.mxu0 %v689
      %v915 = vpop.f32.mrf.mxu0
      %v916 = vadd.f32 %v592, %v915
      %v917 = vpop.f32.mrf.mxu0
      %918 = vdwg.mxu0
      %s919 = sadd.s32 %s194, 2
      %s920 = smul.u32 %s919, 16
      %s921 = scalar_lea.vmem %s183, %s920
      %v922 = vld [vmem:[%s921] sm:$0xff]
      %v923 = vld [vmem:[%s921 + $0x8] sm:$0xff]
      %v924 = vld [vmem:[%s921 + $0x10] sm:$0xff]
      %v925 = vld [vmem:[%s921 + $0x18] sm:$0xff]
      %v926 = vld [vmem:[%s921 + $0x20] sm:$0xff]
      %v927 = vld [vmem:[%s921 + $0x28] sm:$0xff]
      %v928 = vld [vmem:[%s921 + $0x30] sm:$0xff]
      %v929 = vld [vmem:[%s921 + $0x38] sm:$0xff]
      %v930 = vld [vmem:[%s921 + $0x40] sm:$0xff]
      %v931 = vld [vmem:[%s921 + $0x48] sm:$0xff]
      %v932 = vld [vmem:[%s921 + $0x50] sm:$0xff]
      %v933 = vld [vmem:[%s921 + $0x58] sm:$0xff]
      %v934 = vld [vmem:[%s921 + $0x60] sm:$0xff]
      %v935 = vld [vmem:[%s921 + $0x68] sm:$0xff]
      %v936 = vld [vmem:[%s921 + $0x70] sm:$0xff]
      %v937 = vld [vmem:[%s921 + $0x78] sm:$0xff]
      %v938 = vld [vmem:[%s921 + $0x80] sm:$0xff]
      %v939 = vld [vmem:[%s921 + $0x88] sm:$0xff]
      %v940 = vld [vmem:[%s921 + $0x90] sm:$0xff]
      %v941 = vld [vmem:[%s921 + $0x98] sm:$0xff]
      %v942 = vld [vmem:[%s921 + $0xa0] sm:$0xff]
      %v943 = vld [vmem:[%s921 + $0xa8] sm:$0xff]
      %v944 = vld [vmem:[%s921 + $0xb0] sm:$0xff]
      %v945 = vld [vmem:[%s921 + $0xb8] sm:$0xff]
      %v946 = vld [vmem:[%s921 + $0xc0] sm:$0xff]
      %v947 = vld [vmem:[%s921 + $0xc8] sm:$0xff]
      %v948 = vld [vmem:[%s921 + $0xd0] sm:$0xff]
      %v949 = vld [vmem:[%s921 + $0xd8] sm:$0xff]
      %v950 = vld [vmem:[%s921 + $0xe0] sm:$0xff]
      %v951 = vld [vmem:[%s921 + $0xe8] sm:$0xff]
      %v952 = vld [vmem:[%s921 + $0xf0] sm:$0xff]
      %v953 = vld [vmem:[%s921 + $0xf8] sm:$0xff]
      %s954 = scalar_lea.vmem %s1, 32
      %v955 = vld [vmem:[%s954] sm:$0xff]
      %v956 = vld [vmem:[%s954 + $0x8] sm:$0xf]
      %v958 = vsel %vm269, %v922, 0
      %v961 = vsel %vm269, %v923, 0
      %v964 = vsel %vm269, %v924, 0
      %v967 = vsel %vm269, %v925, 0
      %v970 = vsel %vm269, %v926, 0
      %v973 = vsel %vm269, %v927, 0
      %v976 = vsel %vm269, %v928, 0
      %v979 = vsel %vm269, %v929, 0
      %v982 = vsel %vm269, %v930, 0
      %v985 = vsel %vm269, %v931, 0
      %v988 = vsel %vm269, %v932, 0
      %v991 = vsel %vm269, %v933, 0
      %v994 = vsel %vm269, %v934, 0
      %v997 = vsel %vm269, %v935, 0
      %v1000 = vsel %vm269, %v936, 0
      %v1003 = vsel %vm269, %v937, 0
      %v1006 = vsel %vm269, %v938, 0
      %v1009 = vsel %vm269, %v939, 0
      %v1012 = vsel %vm269, %v940, 0
      %v1015 = vsel %vm269, %v941, 0
      %v1018 = vsel %vm269, %v942, 0
      %v1021 = vsel %vm269, %v943, 0
      %v1024 = vsel %vm269, %v944, 0
      %v1027 = vsel %vm269, %v945, 0
      %v1030 = vsel %vm269, %v946, 0
      %v1033 = vsel %vm269, %v947, 0
      %v1036 = vsel %vm269, %v948, 0
      %v1039 = vsel %vm269, %v949, 0
      %v1042 = vsel %vm269, %v950, 0
      %v1045 = vsel %vm269, %v951, 0
      %v1048 = vsel %vm269, %v952, 0
      %v1051 = vsel %vm269, %v953, 0
      %v1054 = vsel %vm366, %v956, 0
      %1056 = vmatprep.subr.mxu0 0.0
      %1057 = vmatpush1.msra.mxu0 0.0
      %1058 = vmatprep.subr.mxu0 0.0
      %1059 = vmatpush1.msra.mxu0 0.0
      %1060 = vmatprep.subr.mxu0 0.0
      %1061 = vmatpush1.msra.mxu0 0.0
      %1062 = vmatprep.subr.mxu0 0.0
      %1063 = vmatpush1.msra.mxu0 0.0
      %1064 = vmatprep.subr.mxu0 0.0
      %1065 = vmatpush1.msra.mxu0 0.0
      %1066 = vmatprep.subr.mxu0 0.0
      %1067 = vmatpush1.msra.mxu0 0.0
      %1068 = vmatprep.subr.mxu0 0.0
      %1069 = vmatpush1.msra.mxu0 0.0
      %1070 = vmatprep.subr.mxu0 0.0
      %1071 = vmatpush1.msra.mxu0 0.0
      %1072 = vmatprep.subr.mxu0 0.0
      %1073 = vmatpush1.msra.mxu0 0.0
      %1074 = vmatprep.subr.mxu0 0.0
      %1075 = vmatpush1.msra.mxu0 0.0
      %1076 = vmatprep.subr.mxu0 0.0
      %1077 = vmatpush1.msra.mxu0 0.0
      %1078 = vmatprep.subr.mxu0 0.0
      %1079 = vmatpush1.msra.mxu0 0.0
      %1080 = vmatprep.subr.mxu0 0.0
      %1081 = vmatpush1.msra.mxu0 0.0
      %1082 = vmatprep.subr.mxu0 0.0
      %1083 = vmatpush1.msra.mxu0 0.0
      %1084 = vmatprep.subr.mxu0 0.0
      %1085 = vmatpush1.msra.mxu0 %v1054
      %1086 = vmatprep.subr.mxu0 0.0
      %1087 = vmatpush1.msra.mxu0 %v955
      %1088 = vmatprep.subr.mxu0 0.0
      %1089 = vmatpush2.msra.mxu0 0.0
      %1090 = vmatprep.subr.mxu0 0.0
      %1091 = vmatpush2.msra.mxu0 0.0
      %1092 = vmatprep.subr.mxu0 0.0
      %1093 = vmatpush2.msra.mxu0 0.0
      %1094 = vmatprep.subr.mxu0 0.0
      %1095 = vmatpush2.msra.mxu0 0.0
      %1096 = vmatprep.subr.mxu0 0.0
      %1097 = vmatpush2.msra.mxu0 0.0
      %1098 = vmatprep.subr.mxu0 0.0
      %1099 = vmatpush2.msra.mxu0 0.0
      %1100 = vmatprep.subr.mxu0 0.0
      %1101 = vmatpush2.msra.mxu0 0.0
      %1102 = vmatprep.subr.mxu0 0.0
      %1103 = vmatpush2.msra.mxu0 0.0
      %1104 = vmatprep.subr.mxu0 0.0
      %1105 = vmatpush2.msra.mxu0 0.0
      %1106 = vmatprep.subr.mxu0 0.0
      %1107 = vmatpush2.msra.mxu0 0.0
      %1108 = vmatprep.subr.mxu0 0.0
      %1109 = vmatpush2.msra.mxu0 0.0
      %1110 = vmatprep.subr.mxu0 0.0
      %1111 = vmatpush2.msra.mxu0 0.0
      %1112 = vmatprep.subr.mxu0 0.0
      %1113 = vmatpush2.msra.mxu0 0.0
      %1114 = vmatprep.subr.mxu0 0.0
      %1115 = vmatpush2.msra.mxu0 0.0
      %1116 = vmatprep.subr.mxu0 0.0
      %1117 = vmatpush2.msra.mxu0 0.0
      %1118 = vmatprep.subr.mxu0 0.0
      %1119 = vmatpush2.msra.mxu0 0.0
      %1120 = vmatprep.mubr.f32.mxu0 0.0
      %1121 = vmatmul.mubr.f32.gmra.mxu0 %v958
      %v1122 = vpop.f32.mrf.mxu0
      %v1123 = vadd.f32 0.0, %v1122
      %v1124 = vpop.f32.mrf.mxu0
      %1125 = vmatprep.mubr.f32.mxu0 0.0
      %1126 = vmatmul.mubr.f32.gmra.mxu0 %v961
      %v1127 = vpop.f32.mrf.mxu0
      %v1128 = vadd.f32 0.0, %v1127
      %v1129 = vpop.f32.mrf.mxu0
      %1130 = vmatprep.mubr.f32.mxu0 0.0
      %1131 = vmatmul.mubr.f32.gmra.mxu0 %v964
      %v1132 = vpop.f32.mrf.mxu0
      %v1133 = vadd.f32 0.0, %v1132
      %v1134 = vpop.f32.mrf.mxu0
      %1135 = vmatprep.mubr.f32.mxu0 0.0
      %1136 = vmatmul.mubr.f32.gmra.mxu0 %v967
      %v1137 = vpop.f32.mrf.mxu0
      %v1138 = vadd.f32 0.0, %v1137
      %v1139 = vpop.f32.mrf.mxu0
      %1140 = vmatprep.mubr.f32.mxu0 0.0
      %1141 = vmatmul.mubr.f32.gmra.mxu0 %v970
      %v1142 = vpop.f32.mrf.mxu0
      %v1143 = vadd.f32 0.0, %v1142
      %v1144 = vpop.f32.mrf.mxu0
      %1145 = vmatprep.mubr.f32.mxu0 0.0
      %1146 = vmatmul.mubr.f32.gmra.mxu0 %v973
      %v1147 = vpop.f32.mrf.mxu0
      %v1148 = vadd.f32 0.0, %v1147
      %v1149 = vpop.f32.mrf.mxu0
      %1150 = vmatprep.mubr.f32.mxu0 0.0
      %1151 = vmatmul.mubr.f32.gmra.mxu0 %v976
      %v1152 = vpop.f32.mrf.mxu0
      %v1153 = vadd.f32 0.0, %v1152
      %v1154 = vpop.f32.mrf.mxu0
      %1155 = vmatprep.mubr.f32.mxu0 0.0
      %1156 = vmatmul.mubr.f32.gmra.mxu0 %v979
      %v1157 = vpop.f32.mrf.mxu0
      %v1158 = vadd.f32 0.0, %v1157
      %v1159 = vpop.f32.mrf.mxu0
      %1160 = vmatprep.mubr.f32.mxu0 0.0
      %1161 = vmatmul.mubr.f32.gmra.mxu0 %v982
      %v1162 = vpop.f32.mrf.mxu0
      %v1163 = vadd.f32 0.0, %v1162
      %v1164 = vpop.f32.mrf.mxu0
      %1165 = vmatprep.mubr.f32.mxu0 0.0
      %1166 = vmatmul.mubr.f32.gmra.mxu0 %v985
      %v1167 = vpop.f32.mrf.mxu0
      %v1168 = vadd.f32 0.0, %v1167
      %v1169 = vpop.f32.mrf.mxu0
      %1170 = vmatprep.mubr.f32.mxu0 0.0
      %1171 = vmatmul.mubr.f32.gmra.mxu0 %v988
      %v1172 = vpop.f32.mrf.mxu0
      %v1173 = vadd.f32 0.0, %v1172
      %v1174 = vpop.f32.mrf.mxu0
      %1175 = vmatprep.mubr.f32.mxu0 0.0
      %1176 = vmatmul.mubr.f32.gmra.mxu0 %v991
      %v1177 = vpop.f32.mrf.mxu0
      %v1178 = vadd.f32 0.0, %v1177
      %v1179 = vpop.f32.mrf.mxu0
      %1180 = vmatprep.mubr.f32.mxu0 0.0
      %1181 = vmatmul.mubr.f32.gmra.mxu0 %v994
      %v1182 = vpop.f32.mrf.mxu0
      %v1183 = vadd.f32 0.0, %v1182
      %v1184 = vpop.f32.mrf.mxu0
      %1185 = vmatprep.mubr.f32.mxu0 0.0
      %1186 = vmatmul.mubr.f32.gmra.mxu0 %v997
      %v1187 = vpop.f32.mrf.mxu0
      %v1188 = vadd.f32 0.0, %v1187
      %v1189 = vpop.f32.mrf.mxu0
      %1190 = vmatprep.mubr.f32.mxu0 0.0
      %1191 = vmatmul.mubr.f32.gmra.mxu0 %v1000
      %v1192 = vpop.f32.mrf.mxu0
      %v1193 = vadd.f32 0.0, %v1192
      %v1194 = vpop.f32.mrf.mxu0
      %1195 = vmatprep.mubr.f32.mxu0 0.0
      %1196 = vmatmul.mubr.f32.gmra.mxu0 %v1003
      %v1197 = vpop.f32.mrf.mxu0
      %v1198 = vadd.f32 0.0, %v1197
      %v1199 = vpop.f32.mrf.mxu0
      %1200 = vmatprep.mubr.f32.mxu0 0.0
      %1201 = vmatmul.mubr.f32.gmra.mxu0 %v1006
      %v1202 = vpop.f32.mrf.mxu0
      %v1203 = vadd.f32 0.0, %v1202
      %v1204 = vpop.f32.mrf.mxu0
      %1205 = vmatprep.mubr.f32.mxu0 0.0
      %1206 = vmatmul.mubr.f32.gmra.mxu0 %v1009
      %v1207 = vpop.f32.mrf.mxu0
      %v1208 = vadd.f32 0.0, %v1207
      %v1209 = vpop.f32.mrf.mxu0
      %1210 = vmatprep.mubr.f32.mxu0 0.0
      %1211 = vmatmul.mubr.f32.gmra.mxu0 %v1012
      %v1212 = vpop.f32.mrf.mxu0
      %v1213 = vadd.f32 0.0, %v1212
      %v1214 = vpop.f32.mrf.mxu0
      %1215 = vmatprep.mubr.f32.mxu0 0.0
      %1216 = vmatmul.mubr.f32.gmra.mxu0 %v1015
      %v1217 = vpop.f32.mrf.mxu0
      %v1218 = vadd.f32 0.0, %v1217
      %v1219 = vpop.f32.mrf.mxu0
      %1220 = vmatprep.mubr.f32.mxu0 0.0
      %1221 = vmatmul.mubr.f32.gmra.mxu0 %v1018
      %v1222 = vpop.f32.mrf.mxu0
      %v1223 = vadd.f32 0.0, %v1222
      %v1224 = vpop.f32.mrf.mxu0
      %1225 = vmatprep.mubr.f32.mxu0 0.0
      %1226 = vmatmul.mubr.f32.gmra.mxu0 %v1021
      %v1227 = vpop.f32.mrf.mxu0
      %v1228 = vadd.f32 0.0, %v1227
      %v1229 = vpop.f32.mrf.mxu0
      %1230 = vmatprep.mubr.f32.mxu0 0.0
      %1231 = vmatmul.mubr.f32.gmra.mxu0 %v1024
      %v1232 = vpop.f32.mrf.mxu0
      %v1233 = vadd.f32 0.0, %v1232
      %v1234 = vpop.f32.mrf.mxu0
      %1235 = vmatprep.mubr.f32.mxu0 0.0
      %1236 = vmatmul.mubr.f32.gmra.mxu0 %v1027
      %v1237 = vpop.f32.mrf.mxu0
      %v1238 = vadd.f32 0.0, %v1237
      %v1239 = vpop.f32.mrf.mxu0
      %1240 = vmatprep.mubr.f32.mxu0 0.0
      %1241 = vmatmul.mubr.f32.gmra.mxu0 %v1030
      %v1242 = vpop.f32.mrf.mxu0
      %v1243 = vadd.f32 0.0, %v1242
      %v1244 = vpop.f32.mrf.mxu0
      %1245 = vmatprep.mubr.f32.mxu0 0.0
      %1246 = vmatmul.mubr.f32.gmra.mxu0 %v1033
      %v1247 = vpop.f32.mrf.mxu0
      %v1248 = vadd.f32 0.0, %v1247
      %v1249 = vpop.f32.mrf.mxu0
      %1250 = vmatprep.mubr.f32.mxu0 0.0
      %1251 = vmatmul.mubr.f32.gmra.mxu0 %v1036
      %v1252 = vpop.f32.mrf.mxu0
      %v1253 = vadd.f32 0.0, %v1252
      %v1254 = vpop.f32.mrf.mxu0
      %1255 = vmatprep.mubr.f32.mxu0 0.0
      %1256 = vmatmul.mubr.f32.gmra.mxu0 %v1039
      %v1257 = vpop.f32.mrf.mxu0
      %v1258 = vadd.f32 0.0, %v1257
      %v1259 = vpop.f32.mrf.mxu0
      %1260 = vmatprep.mubr.f32.mxu0 0.0
      %1261 = vmatmul.mubr.f32.gmra.mxu0 %v1042
      %v1262 = vpop.f32.mrf.mxu0
      %v1263 = vadd.f32 0.0, %v1262
      %v1264 = vpop.f32.mrf.mxu0
      %1265 = vmatprep.mubr.f32.mxu0 0.0
      %1266 = vmatmul.mubr.f32.gmra.mxu0 %v1045
      %v1267 = vpop.f32.mrf.mxu0
      %v1268 = vadd.f32 0.0, %v1267
      %v1269 = vpop.f32.mrf.mxu0
      %1270 = vmatprep.mubr.f32.mxu0 0.0
      %1271 = vmatmul.mubr.f32.gmra.mxu0 %v1048
      %v1272 = vpop.f32.mrf.mxu0
      %v1273 = vadd.f32 0.0, %v1272
      %v1274 = vpop.f32.mrf.mxu0
      %1275 = vmatprep.mubr.f32.mxu0 0.0
      %1276 = vmatmul.mubr.f32.gmra.mxu0 %v1051
      %v1277 = vpop.f32.mrf.mxu0
      %v1278 = vadd.f32 0.0, %v1277
      %v1279 = vpop.f32.mrf.mxu0
      %1280 = vdwg.mxu0
      %v1281 = vadd.f32 %v761, %v1123
      %v1282 = vadd.f32 %v766, %v1128
      %v1283 = vadd.f32 %v771, %v1133
      %v1284 = vadd.f32 %v776, %v1138
      %v1285 = vadd.f32 %v781, %v1143
      %v1286 = vadd.f32 %v786, %v1148
      %v1287 = vadd.f32 %v791, %v1153
      %v1288 = vadd.f32 %v796, %v1158
      %v1289 = vadd.f32 %v801, %v1163
      %v1290 = vadd.f32 %v806, %v1168
      %v1291 = vadd.f32 %v811, %v1173
      %v1292 = vadd.f32 %v816, %v1178
      %v1293 = vadd.f32 %v821, %v1183
      %v1294 = vadd.f32 %v826, %v1188
      %v1295 = vadd.f32 %v831, %v1193
      %v1296 = vadd.f32 %v836, %v1198
      %v1297 = vadd.f32 %v841, %v1203
      %v1298 = vadd.f32 %v846, %v1208
      %v1299 = vadd.f32 %v851, %v1213
      %v1300 = vadd.f32 %v856, %v1218
      %v1301 = vadd.f32 %v861, %v1223
      %v1302 = vadd.f32 %v866, %v1228
      %v1303 = vadd.f32 %v871, %v1233
      %v1304 = vadd.f32 %v876, %v1238
      %v1305 = vadd.f32 %v881, %v1243
      %v1306 = vadd.f32 %v886, %v1248
      %v1307 = vadd.f32 %v891, %v1253
      %v1308 = vadd.f32 %v896, %v1258
      %v1309 = vadd.f32 %v901, %v1263
      %v1310 = vadd.f32 %v906, %v1268
      %v1311 = vadd.f32 %v911, %v1273
      %v1312 = vadd.f32 %v916, %v1278
      %v1313 = vld [vmem:[%s2] sm:$0x1]
      %v1315 = vlaneseq
      %v1316 = vshrl.u32 %v1315, 7
      %v1317 = vsub.s32 0, %v1316
      %v1318 = vrot.slane %v1313, %v1317
      %v1320 = vadd.f32 %v1281, %v1318
      %v1321 = vadd.f32 %v1282, %v1318
      %v1322 = vadd.f32 %v1283, %v1318
      %v1323 = vadd.f32 %v1284, %v1318
      %v1324 = vadd.f32 %v1285, %v1318
      %v1325 = vadd.f32 %v1286, %v1318
      %v1326 = vadd.f32 %v1287, %v1318
      %v1327 = vadd.f32 %v1288, %v1318
      %v1328 = vadd.f32 %v1289, %v1318
      %v1329 = vadd.f32 %v1290, %v1318
      %v1330 = vadd.f32 %v1291, %v1318
      %v1331 = vadd.f32 %v1292, %v1318
      %v1332 = vadd.f32 %v1293, %v1318
      %v1333 = vadd.f32 %v1294, %v1318
      %v1334 = vadd.f32 %v1295, %v1318
      %v1335 = vadd.f32 %v1296, %v1318
      %v1336 = vadd.f32 %v1297, %v1318
      %v1337 = vadd.f32 %v1298, %v1318
      %v1338 = vadd.f32 %v1299, %v1318
      %v1339 = vadd.f32 %v1300, %v1318
      %v1340 = vadd.f32 %v1301, %v1318
      %v1341 = vadd.f32 %v1302, %v1318
      %v1342 = vadd.f32 %v1303, %v1318
      %v1343 = vadd.f32 %v1304, %v1318
      %v1344 = vadd.f32 %v1305, %v1318
      %v1345 = vadd.f32 %v1306, %v1318
      %v1346 = vadd.f32 %v1307, %v1318
      %v1347 = vadd.f32 %v1308, %v1318
      %v1348 = vadd.f32 %v1309, %v1318
      %v1349 = vadd.f32 %v1310, %v1318
      %v1350 = vadd.f32 %v1311, %v1318
      %v1351 = vadd.f32 %v1312, %v1318
      %1352 = vst [vmem:[%s192] sm:$0xff] %v1320
      %1353 = vst [vmem:[%s192 + $0x8] sm:$0xff] %v1321
      %1354 = vst [vmem:[%s192 + $0x10] sm:$0xff] %v1322
      %1355 = vst [vmem:[%s192 + $0x18] sm:$0xff] %v1323
      %1356 = vst [vmem:[%s192 + $0x20] sm:$0xff] %v1324
      %1357 = vst [vmem:[%s192 + $0x28] sm:$0xff] %v1325
      %1358 = vst [vmem:[%s192 + $0x30] sm:$0xff] %v1326
      %1359 = vst [vmem:[%s192 + $0x38] sm:$0xff] %v1327
      %1360 = vst [vmem:[%s192 + $0x40] sm:$0xff] %v1328
      %1361 = vst [vmem:[%s192 + $0x48] sm:$0xff] %v1329
      %1362 = vst [vmem:[%s192 + $0x50] sm:$0xff] %v1330
      %1363 = vst [vmem:[%s192 + $0x58] sm:$0xff] %v1331
      %1364 = vst [vmem:[%s192 + $0x60] sm:$0xff] %v1332
      %1365 = vst [vmem:[%s192 + $0x68] sm:$0xff] %v1333
      %1366 = vst [vmem:[%s192 + $0x70] sm:$0xff] %v1334
      %1367 = vst [vmem:[%s192 + $0x78] sm:$0xff] %v1335
      %1368 = vst [vmem:[%s192 + $0x80] sm:$0xff] %v1336
      %1369 = vst [vmem:[%s192 + $0x88] sm:$0xff] %v1337
      %1370 = vst [vmem:[%s192 + $0x90] sm:$0xff] %v1338
      %1371 = vst [vmem:[%s192 + $0x98] sm:$0xff] %v1339
      %1372 = vst [vmem:[%s192 + $0xa0] sm:$0xff] %v1340
      %1373 = vst [vmem:[%s192 + $0xa8] sm:$0xff] %v1341
      %1374 = vst [vmem:[%s192 + $0xb0] sm:$0xff] %v1342
      %1375 = vst [vmem:[%s192 + $0xb8] sm:$0xff] %v1343
      %1376 = vst [vmem:[%s192 + $0xc0] sm:$0xff] %v1344
      %1377 = vst [vmem:[%s192 + $0xc8] sm:$0xff] %v1345
      %1378 = vst [vmem:[%s192 + $0xd0] sm:$0xff] %v1346
      %1379 = vst [vmem:[%s192 + $0xd8] sm:$0xff] %v1347
      %1380 = vst [vmem:[%s192 + $0xe0] sm:$0xff] %v1348
      %1381 = vst [vmem:[%s192 + $0xe8] sm:$0xff] %v1349
      %1382 = vst [vmem:[%s192 + $0xf0] sm:$0xff] %v1350
      %1383 = vst [vmem:[%s192 + $0xf8] sm:$0xff] %v1351
      %s1384 = smul.u32 32, %s19
      %p1385 = scmp.lt.s32.totalorder %s18, 1
      %s1386 = scalar_select %p1385, %s18, 1
      %p1387 = scmp.lt.s32.totalorder %s1384, 31
      %s1388 = scalar_select %p1387, %s1384, 31
      %s1389 = smul.addr %s1386, 32
      %s1390 = sadd.s32 %s1388, %s1389
      %s1391 = smul.addr %s1390, 8
      %s1392 = scalar_lea.vmem %s3, %s1391
      // Predicated region
      $region33: #{_position_conv2d_impl.1} parent=31 // pred_check
        %p1393 = pneg %p114
      $region34: #{_position_conv2d_impl.1} parent=31 // pred_check_branch
        %1395 = sbr.rel (%p1393) target = $region36
      $region35: #{_position_conv2d_impl.1} parent=31 // pred_region
        %s1396 = smul.u32 32, %s19
      $region36: #{_position_conv2d_impl.1} parent=31 // pred_fallthru
        _
    $region32: #{_position_conv2d_impl.1} parent=5 // pred_fallthru
      _
    %p1397 = scmp.le.s32.totalorder 2, %s9
    // Predicated region
    $region37: #{_position_conv2d_impl.1} parent=5 // pred_check
      %p1398 = pneg %p1397
    $region38: #{_position_conv2d_impl.1} parent=5 // pred_check_branch
      %1400 = sbr.rel (%p1398) target = $region40
    $region39: #{_position_conv2d_impl.1} parent=5 // pred_region
      %s1401 = ssub.s32 %s9, 2
      // Predicated region
      $region41: #{_position_conv2d_impl.1} parent=39 // pred_check
        %p1402 = pneg %p120
      $region42: #{_position_conv2d_impl.1} parent=39 // pred_check_branch
        %1404 = sbr.rel (%p1402) target = $region44
      $region43: #{_position_conv2d_impl.1} parent=39 // pred_region
        %s1405 = smul.u32 32, %s21
        %p1406 = scmp.lt.s32.totalorder %s20, 1
        %s1407 = scalar_select %p1406, %s20, 1
        %p1408 = scmp.lt.s32.totalorder %s1405, 31
        %s1409 = scalar_select %p1408, %s1405, 31
        %s1410 = smul.addr %s1407, 32
        %s1411 = sadd.s32 %s1409, %s1410
        %s1412 = smul.addr %s1411, 8
        %s1413 = scalar_lea.vmem %s3, %s1412
      $region44: #{_position_conv2d_impl.1} parent=39 // pred_fallthru
        _
    $region40: #{_position_conv2d_impl.1} parent=5 // pred_fallthru
      _
  $region6: #{_position_conv2d_impl.1} parent=0 // loop_footer
    %s13 = sadd.s32 1, %s9
  $region7: #{_position_conv2d_impl.1} parent=0 // loop_footer_branch
    %8 = sbr.rel target = $region3
  $region8: #{_position_conv2d_impl.1} parent=0 // loop_exit
    _

</llo_original>
